<compile_context>
chip_gen: v7x
topology: tpu7x:2x2x1
jax: 0.10.0
libtpu: 0.0.40
codegen_flags: <defaults>
</compile_context>

<pallas_src>
import jax
import jax.numpy as jnp
import numpy as np
from jax import lax
from jax.experimental import pallas as pl
from jax.experimental.pallas import tpu as pltpu

T_SEQ = 1024   # hard-coded in RNNDecoder.forward: torch.zeros(1024, bs, hidden_dim)
UNROLL = 8     # steps per output chunk (full (8, TB) sublane-tile stores)


def _softplus(x):
    # matches torch.nn.Softplus(beta=1, threshold=20)
    return jnp.where(x > 20.0, x, jnp.log(1.0 + jnp.exp(jnp.minimum(x, 20.0))))


def _default_min_batch_tiles():
    # v7x has 2 TensorCores/chip: give the "parallel" batch-tile grid axis >= 2 tiles
    # there so both cores run their own recurrence chain. Best-effort; never fails.
    try:
        kind = jax.devices()[0].device_kind.lower()
        return 2 if ("v7" in kind or "tpu7" in kind) else 1
    except Exception:
        return 1


def decoder_kernel(zt_ref, wfc_ref, bfc_ref, whh_ref, woutT_ref, bout_ref, o_ref):
    # zt:(Z,TB) f32   wfc:(H,Z) f32   bfc:(H,1) f32
    # whh:(3H,H) bf16 = [W_hr; W_hz; W_hn]   woutT:(H,1) f32   bout:(1,1) f32
    H = wfc_ref.shape[0]
    tb = zt_ref.shape[1]
    seq_len = o_ref.shape[0]
    unroll = UNROLL if seq_len % UNROLL == 0 else 1
    n_chunks = seq_len // unroll

    # h0 = softplus(W_fc z + b_fc), batch on lanes -> (H, TB).  One-time, keep f32.
    h0 = _softplus(
        jnp.dot(wfc_ref[...], zt_ref[...], preferred_element_type=jnp.float32)
        + bfc_ref[...])

    # Loop-invariant operands hoisted out of the recurrence (no per-iter broadcasts).
    whh = whh_ref[...]                                       # (3H, H) bf16, resident
    wout_b = jnp.broadcast_to(woutT_ref[...], (H, tb))       # (H, TB)
    bout_b = jnp.broadcast_to(bout_ref[...], (unroll, tb))   # (UNROLL, TB)

    def chunk(c, h):
        rows = []
        for _ in range(unroll):            # static unroll: 8-step scheduler window
            # one fused MXU matmul for all three gates, bf16 in / f32 out
            g = jnp.dot(whh, h.astype(jnp.bfloat16),
                        preferred_element_type=jnp.float32)  # (3H, TB)
            r = jax.nn.sigmoid(g[0:H])
            u = jax.nn.sigmoid(g[H:2 * H])
            n = jnp.tanh(r * g[2 * H:3 * H])
            h = (1.0 - u) * n + u * h                        # (H, TB), f32 carry
            # fc_out logits via VPU mul + sublane (XLU) reduce -> MXU stays free
            rows.append(jnp.sum(h * wout_b, axis=0, keepdims=True))   # (1, TB)
        logits = jnp.concatenate(rows, axis=0)               # (UNROLL, TB)
        base = pl.multiple_of(c * unroll, unroll)
        o_ref[pl.ds(base, unroll), :] = jax.nn.sigmoid(logits + bout_b)
        return h

    lax.fori_loop(0, n_chunks, chunk, h0)


def rnn_decoder(z, params, *, seq_len=T_SEQ, tb=128, min_batch_tiles=None):
    """z: (B, z_dim) float32 -> (B, seq_len) float32 (matches PyTorch RNNDecoder)."""
    wfc, bfc, whh, wout, bout = params
    B, Z = z.shape
    H = wfc.shape[0]
    assert whh.shape == (3 * H, H)
    assert tb % 128 == 0, "batch tile must be lane-aligned (multiple of 128)"

    if min_batch_tiles is None:
        min_batch_tiles = _default_min_batch_tiles()
    n_blk = max(pl.cdiv(B, tb), min_batch_tiles)
    per = -(-B // n_blk)                 # real samples per batch tile
    Bp = n_blk * tb

    # ---- glue: batch-on-lanes layout; scatter samples across tiles. Padding lanes
    # compute finite garbage (softplus(bias) recurrence) and are discarded. ----
    s = np.arange(B)
    cols = jnp.asarray((s // per) * tb + (s % per), jnp.int32)
    zT = jnp.zeros((Z, Bp), jnp.float32).at[:, cols].set(z.T.astype(jnp.float32))

    wfc_c = wfc.astype(jnp.float32)                      # (H, Z)
    bfc_c = bfc.reshape(H, 1).astype(jnp.float32)        # (H, 1)
    whh_c = whh.astype(jnp.bfloat16)                     # (3H, H)  bf16 MXU operand
    woutT = wout.astype(jnp.float32).reshape(H, 1)       # (H, 1)   sublane-aligned
    bout_c = bout.reshape(1, 1).astype(jnp.float32)      # (1, 1)

    out_tb = pl.pallas_call(
        decoder_kernel,
        out_shape=jax.ShapeDtypeStruct((seq_len, Bp), jnp.float32),
        grid_spec=pltpu.PrefetchScalarGridSpec(
            num_scalar_prefetch=0,
            grid=(n_blk,),
            in_specs=[
                pl.BlockSpec((Z, tb), lambda i: (0, i)),       # per-tile latents
                pl.BlockSpec((H, Z), lambda i: (0, 0)),        # fc weight (resident)
                pl.BlockSpec((H, 1), lambda i: (0, 0)),        # fc bias
                pl.BlockSpec((3 * H, H), lambda i: (0, 0)),    # GRU weight_hh (bf16)
                pl.BlockSpec((H, 1), lambda i: (0, 0)),        # fc_out weight (as col)
                pl.BlockSpec((1, 1), lambda i: (0, 0)),        # fc_out bias
            ],
            out_specs=pl.BlockSpec((seq_len, tb), lambda i: (0, i)),
        ),
        compiler_params=pltpu.CompilerParams(dimension_semantics=("parallel",)),
    )(zT, wfc_c, bfc_c, whh_c, woutT, bout_c)

    # outp.squeeze().transpose(0, 1): (seq_len, B) -> (B, seq_len)
    return out_tb[:, cols].T


def reference(z, params, seq_len=T_SEQ):
    """Plain-JAX f32 reference mirroring the PyTorch module (zero GRU inputs, no bias)."""
    wfc, bfc, whh, wout, bout = params
    H = wfc.shape[0]
    h = _softplus(z @ wfc.T + bfc)                       # (B, H)

    def step(h, _):
        g = h @ whh.T                                    # (B, 3H)
        r = jax.nn.sigmoid(g[:, 0:H])
        u = jax.nn.sigmoid(g[:, H:2 * H])
        n = jnp.tanh(r * g[:, 2 * H:3 * H])
        h_new = (1.0 - u) * n + u * h
        o = jax.nn.sigmoid(h_new @ wout.T + bout)        # (B, 1)
        return h_new, o[:, 0]

    _, outs = lax.scan(step, h, None, length=seq_len)    # (seq_len, B)
    return outs.T                                        # (B, seq_len)


if __name__ == "__main__":
    key = jax.random.PRNGKey(0)
    ks = jax.random.split(key, 6)
    B = 2
    Z_DIM = 8          # params.z_dim
    H_DEC = 32         # params.decoder_hidden
    # params.hidden_dim (GRU input size) is irrelevant here: the forward feeds
    # all-zero inputs and the GRU has bias=False, so weight_ih never contributes.

    z = jax.random.normal(ks[0], (B, Z_DIM), jnp.float32)

    # deterministic synthetic parameters (module shapes from __init__)
    wfc = jax.random.normal(ks[1], (H_DEC, Z_DIM), jnp.float32) * 0.3      # fc.weight
    bfc = jax.random.normal(ks[2], (H_DEC,), jnp.float32) * 0.1            # fc.bias
    whh = jax.random.normal(ks[3], (3 * H_DEC, H_DEC), jnp.float32) * 0.1  # rnn.weight_hh_l0
    wout = jax.random.normal(ks[4], (1, H_DEC), jnp.float32) * 0.3         # fc_out.weight
    bout = jax.random.normal(ks[5], (1,), jnp.float32) * 0.1               # fc_out.bias
    params = (wfc, bfc, whh, wout, bout)

    out = jax.block_until_ready(rnn_decoder(z, params))
    ref = jax.block_until_ready(reference(z, params))
    assert out.shape == (B, T_SEQ)
    # Kernel uses bf16 MXU operands inside the 1024-step recurrence (per perf review);
    # expected end-to-end drift vs the f32 reference is ~1e-3 on sigmoid outputs in
    # [0,1], so 1e-2 keeps a solid margin while still catching real bugs.
    np.testing.assert_allclose(np.asarray(out), np.asarray(ref), rtol=1e-2, atol=1e-2)
    print("KERNEL_OK")
</pallas_src>

<mosaic_0001>
module attributes {stable_mosaic.version = 11 : i64} {
  func.func @decoder_kernel(%arg0: i32, %arg1: memref<8x128xf32, #tpu.memory_space<vmem>>, %arg2: memref<32x8xf32, #tpu.memory_space<vmem>>, %arg3: memref<32x1xf32, #tpu.memory_space<vmem>>, %arg4: memref<96x32xbf16, #tpu.memory_space<vmem>>, %arg5: memref<32x1xf32, #tpu.memory_space<vmem>>, %arg6: memref<1x1xf32, #tpu.memory_space<vmem>>, %arg7: memref<1024x128xf32, #tpu.memory_space<vmem>>) attributes {dimension_semantics = [#tpu.dimension_semantics<parallel>], iteration_bounds = array<i64: 1>, scalar_prefetch = 0 : i64, scratch_operands = 0 : i64, tpu.core_type = #tpu.core_type<tc>, window_params = [{transform_indices = @transform_0, window_bounds = array<i64: 8, 128>}, {pipeline_mode = #tpu.pipeline_mode<synchronous>, transform_indices = @transform_1, window_bounds = array<i64: 32, 8>}, {pipeline_mode = #tpu.pipeline_mode<synchronous>, transform_indices = @transform_2, window_bounds = array<i64: 32, 1>}, {pipeline_mode = #tpu.pipeline_mode<synchronous>, transform_indices = @transform_3, window_bounds = array<i64: 96, 32>}, {pipeline_mode = #tpu.pipeline_mode<synchronous>, transform_indices = @transform_4, window_bounds = array<i64: 32, 1>}, {pipeline_mode = #tpu.pipeline_mode<synchronous>, transform_indices = @transform_5, window_bounds = array<i64: 1, 1>}, {transform_indices = @transform_6, window_bounds = array<i64: 1024, 128>}]} {
    %c0 = arith.constant 0 : index
    %c0_0 = arith.constant 0 : index
    %0 = vector.load %arg2[%c0, %c0_0] : memref<32x8xf32, #tpu.memory_space<vmem>>, vector<32x8xf32>
    %c0_1 = arith.constant 0 : index
    %c0_2 = arith.constant 0 : index
    %1 = vector.load %arg1[%c0_1, %c0_2] : memref<8x128xf32, #tpu.memory_space<vmem>>, vector<8x128xf32>
    %cst = arith.constant dense<0.000000e+00> : vector<32x128xf32>
    %2 = tpu.matmul %0, %1, %cst {dimension_numbers = #tpu.dot_dimension_numbers<[1], [0], [0], [1], [0, 0, 1, 1], [], []>} : vector<32x8xf32>, vector<8x128xf32>, vector<32x128xf32> -> vector<32x128xf32>
    %c0_3 = arith.constant 0 : index
    %c0_4 = arith.constant 0 : index
    %3 = vector.load %arg3[%c0_3, %c0_4] : memref<32x1xf32, #tpu.memory_space<vmem>>, vector<32x1xf32>
    %4 = vector.broadcast %3 : vector<32x1xf32> to vector<32x128xf32>
    %5 = arith.addf %2, %4 : vector<32x128xf32>
    %cst_5 = arith.constant 2.000000e+01 : f32
    %6 = vector.broadcast %cst_5 : f32 to vector<32x128xf32>
    %7 = arith.cmpf ogt, %5, %6 : vector<32x128xf32>
    %cst_6 = arith.constant 2.000000e+01 : f32
    %8 = vector.broadcast %cst_6 : f32 to vector<32x128xf32>
    %9 = arith.minimumf %5, %8 : vector<32x128xf32>
    %10 = math.exp %9 : vector<32x128xf32>
    %cst_7 = arith.constant 1.000000e+00 : f32
    %11 = vector.broadcast %cst_7 : f32 to vector<32x128xf32>
    %12 = arith.addf %11, %10 : vector<32x128xf32>
    %13 = math.log %12 : vector<32x128xf32>
    %14 = arith.select %7, %5, %13 : vector<32x128xi1>, vector<32x128xf32>
    %c0_8 = arith.constant 0 : index
    %c0_9 = arith.constant 0 : index
    %15 = vector.load %arg4[%c0_8, %c0_9] : memref<96x32xbf16, #tpu.memory_space<vmem>>, vector<96x32xbf16>
    %c0_10 = arith.constant 0 : index
    %c0_11 = arith.constant 0 : index
    %16 = vector.load %arg5[%c0_10, %c0_11] : memref<32x1xf32, #tpu.memory_space<vmem>>, vector<32x1xf32>
    %17 = vector.shape_cast %16 : vector<32x1xf32> to vector<32x1xf32>
    %18 = vector.broadcast %17 : vector<32x1xf32> to vector<32x128xf32>
    %c0_12 = arith.constant 0 : index
    %c0_13 = arith.constant 0 : index
    %19 = vector.load %arg6[%c0_12, %c0_13] : memref<1x1xf32, #tpu.memory_space<vmem>>, vector<1x1xf32>
    %20 = vector.shape_cast %19 : vector<1x1xf32> to vector<1x1xf32>
    %21 = vector.broadcast %20 : vector<1x1xf32> to vector<8x128xf32>
    %c0_i32 = arith.constant 0 : i32
    %c128_i32 = arith.constant 128 : i32
    %22 = arith.addi %c0_i32, %c128_i32 : i32
    %c1_i32 = arith.constant 1 : i32
    %23 = scf.for %arg8 = %c0_i32 to %22 step %c1_i32 iter_args(%arg9 = %14) -> (vector<32x128xf32>)  : i32 {
      %24 = arith.truncf %arg9 : vector<32x128xf32> to vector<32x128xbf16>
      %cst_15 = arith.constant dense<0.000000e+00> : vector<96x128xf32>
      %25 = tpu.matmul %15, %24, %cst_15 {dimension_numbers = #tpu.dot_dimension_numbers<[1], [0], [0], [1], [0, 0, 1, 1], [], []>} : vector<96x32xbf16>, vector<32x128xbf16>, vector<96x128xf32> -> vector<96x128xf32>
      %26 = vector.extract_strided_slice %25 {offsets = [0, 0], sizes = [32, 128], strides = [1, 1]} : vector<96x128xf32> to vector<32x128xf32>
      %27 = arith.negf %26 : vector<32x128xf32>
      %28 = math.exp %27 : vector<32x128xf32>
      %cst_16 = arith.constant 1.000000e+00 : f32
      %29 = vector.broadcast %cst_16 : f32 to vector<32x128xf32>
      %30 = arith.addf %29, %28 : vector<32x128xf32>
      %31 = arith.divf %29, %30 : vector<32x128xf32>
      %32 = vector.extract_strided_slice %25 {offsets = [32, 0], sizes = [32, 128], strides = [1, 1]} : vector<96x128xf32> to vector<32x128xf32>
      %33 = arith.negf %32 : vector<32x128xf32>
      %34 = math.exp %33 : vector<32x128xf32>
      %cst_17 = arith.constant 1.000000e+00 : f32
      %35 = vector.broadcast %cst_17 : f32 to vector<32x128xf32>
      %36 = arith.addf %35, %34 : vector<32x128xf32>
      %37 = arith.divf %35, %36 : vector<32x128xf32>
      %38 = vector.extract_strided_slice %25 {offsets = [64, 0], sizes = [32, 128], strides = [1, 1]} : vector<96x128xf32> to vector<32x128xf32>
      %39 = arith.mulf %31, %38 : vector<32x128xf32>
      %40 = math.tanh %39 : vector<32x128xf32>
      %cst_18 = arith.constant 1.000000e+00 : f32
      %41 = vector.broadcast %cst_18 : f32 to vector<32x128xf32>
      %42 = arith.subf %41, %37 : vector<32x128xf32>
      %43 = arith.mulf %42, %40 : vector<32x128xf32>
      %44 = arith.mulf %37, %arg9 : vector<32x128xf32>
      %45 = arith.addf %43, %44 : vector<32x128xf32>
      %46 = arith.mulf %45, %18 : vector<32x128xf32>
      %cst_19 = arith.constant dense<0.000000e+00> : vector<128xf32>
      %47 = vector.multi_reduction <add>, %46, %cst_19 [0] : vector<32x128xf32> to vector<128xf32>
      %48 = vector.shape_cast %47 : vector<128xf32> to vector<1x128xf32>
      %49 = arith.truncf %45 : vector<32x128xf32> to vector<32x128xbf16>
      %cst_20 = arith.constant dense<0.000000e+00> : vector<96x128xf32>
      %50 = tpu.matmul %15, %49, %cst_20 {dimension_numbers = #tpu.dot_dimension_numbers<[1], [0], [0], [1], [0, 0, 1, 1], [], []>} : vector<96x32xbf16>, vector<32x128xbf16>, vector<96x128xf32> -> vector<96x128xf32>
      %51 = vector.extract_strided_slice %50 {offsets = [0, 0], sizes = [32, 128], strides = [1, 1]} : vector<96x128xf32> to vector<32x128xf32>
      %52 = arith.negf %51 : vector<32x128xf32>
      %53 = math.exp %52 : vector<32x128xf32>
      %cst_21 = arith.constant 1.000000e+00 : f32
      %54 = vector.broadcast %cst_21 : f32 to vector<32x128xf32>
      %55 = arith.addf %54, %53 : vector<32x128xf32>
      %56 = arith.divf %54, %55 : vector<32x128xf32>
      %57 = vector.extract_strided_slice %50 {offsets = [32, 0], sizes = [32, 128], strides = [1, 1]} : vector<96x128xf32> to vector<32x128xf32>
      %58 = arith.negf %57 : vector<32x128xf32>
      %59 = math.exp %58 : vector<32x128xf32>
      %cst_22 = arith.constant 1.000000e+00 : f32
      %60 = vector.broadcast %cst_22 : f32 to vector<32x128xf32>
      %61 = arith.addf %60, %59 : vector<32x128xf32>
      %62 = arith.divf %60, %61 : vector<32x128xf32>
      %63 = vector.extract_strided_slice %50 {offsets = [64, 0], sizes = [32, 128], strides = [1, 1]} : vector<96x128xf32> to vector<32x128xf32>
      %64 = arith.mulf %56, %63 : vector<32x128xf32>
      %65 = math.tanh %64 : vector<32x128xf32>
      %cst_23 = arith.constant 1.000000e+00 : f32
      %66 = vector.broadcast %cst_23 : f32 to vector<32x128xf32>
      %67 = arith.subf %66, %62 : vector<32x128xf32>
      %68 = arith.mulf %67, %65 : vector<32x128xf32>
      %69 = arith.mulf %62, %45 : vector<32x128xf32>
      %70 = arith.addf %68, %69 : vector<32x128xf32>
      %71 = arith.mulf %70, %18 : vector<32x128xf32>
      %cst_24 = arith.constant dense<0.000000e+00> : vector<128xf32>
      %72 = vector.multi_reduction <add>, %71, %cst_24 [0] : vector<32x128xf32> to vector<128xf32>
      %73 = vector.shape_cast %72 : vector<128xf32> to vector<1x128xf32>
      %74 = arith.truncf %70 : vector<32x128xf32> to vector<32x128xbf16>
      %cst_25 = arith.constant dense<0.000000e+00> : vector<96x128xf32>
      %75 = tpu.matmul %15, %74, %cst_25 {dimension_numbers = #tpu.dot_dimension_numbers<[1], [0], [0], [1], [0, 0, 1, 1], [], []>} : vector<96x32xbf16>, vector<32x128xbf16>, vector<96x128xf32> -> vector<96x128xf32>
      %76 = vector.extract_strided_slice %75 {offsets = [0, 0], sizes = [32, 128], strides = [1, 1]} : vector<96x128xf32> to vector<32x128xf32>
      %77 = arith.negf %76 : vector<32x128xf32>
      %78 = math.exp %77 : vector<32x128xf32>
      %cst_26 = arith.constant 1.000000e+00 : f32
      %79 = vector.broadcast %cst_26 : f32 to vector<32x128xf32>
      %80 = arith.addf %79, %78 : vector<32x128xf32>
      %81 = arith.divf %79, %80 : vector<32x128xf32>
      %82 = vector.extract_strided_slice %75 {offsets = [32, 0], sizes = [32, 128], strides = [1, 1]} : vector<96x128xf32> to vector<32x128xf32>
      %83 = arith.negf %82 : vector<32x128xf32>
      %84 = math.exp %83 : vector<32x128xf32>
      %cst_27 = arith.constant 1.000000e+00 : f32
      %85 = vector.broadcast %cst_27 : f32 to vector<32x128xf32>
      %86 = arith.addf %85, %84 : vector<32x128xf32>
      %87 = arith.divf %85, %86 : vector<32x128xf32>
      %88 = vector.extract_strided_slice %75 {offsets = [64, 0], sizes = [32, 128], strides = [1, 1]} : vector<96x128xf32> to vector<32x128xf32>
      %89 = arith.mulf %81, %88 : vector<32x128xf32>
      %90 = math.tanh %89 : vector<32x128xf32>
      %cst_28 = arith.constant 1.000000e+00 : f32
      %91 = vector.broadcast %cst_28 : f32 to vector<32x128xf32>
      %92 = arith.subf %91, %87 : vector<32x128xf32>
      %93 = arith.mulf %92, %90 : vector<32x128xf32>
      %94 = arith.mulf %87, %70 : vector<32x128xf32>
      %95 = arith.addf %93, %94 : vector<32x128xf32>
      %96 = arith.mulf %95, %18 : vector<32x128xf32>
      %cst_29 = arith.constant dense<0.000000e+00> : vector<128xf32>
      %97 = vector.multi_reduction <add>, %96, %cst_29 [0] : vector<32x128xf32> to vector<128xf32>
      %98 = vector.shape_cast %97 : vector<128xf32> to vector<1x128xf32>
      %99 = arith.truncf %95 : vector<32x128xf32> to vector<32x128xbf16>
      %cst_30 = arith.constant dense<0.000000e+00> : vector<96x128xf32>
      %100 = tpu.matmul %15, %99, %cst_30 {dimension_numbers = #tpu.dot_dimension_numbers<[1], [0], [0], [1], [0, 0, 1, 1], [], []>} : vector<96x32xbf16>, vector<32x128xbf16>, vector<96x128xf32> -> vector<96x128xf32>
      %101 = vector.extract_strided_slice %100 {offsets = [0, 0], sizes = [32, 128], strides = [1, 1]} : vector<96x128xf32> to vector<32x128xf32>
      %102 = arith.negf %101 : vector<32x128xf32>
      %103 = math.exp %102 : vector<32x128xf32>
      %cst_31 = arith.constant 1.000000e+00 : f32
      %104 = vector.broadcast %cst_31 : f32 to vector<32x128xf32>
      %105 = arith.addf %104, %103 : vector<32x128xf32>
      %106 = arith.divf %104, %105 : vector<32x128xf32>
      %107 = vector.extract_strided_slice %100 {offsets = [32, 0], sizes = [32, 128], strides = [1, 1]} : vector<96x128xf32> to vector<32x128xf32>
      %108 = arith.negf %107 : vector<32x128xf32>
      %109 = math.exp %108 : vector<32x128xf32>
      %cst_32 = arith.constant 1.000000e+00 : f32
      %110 = vector.broadcast %cst_32 : f32 to vector<32x128xf32>
      %111 = arith.addf %110, %109 : vector<32x128xf32>
      %112 = arith.divf %110, %111 : vector<32x128xf32>
      %113 = vector.extract_strided_slice %100 {offsets = [64, 0], sizes = [32, 128], strides = [1, 1]} : vector<96x128xf32> to vector<32x128xf32>
      %114 = arith.mulf %106, %113 : vector<32x128xf32>
      %115 = math.tanh %114 : vector<32x128xf32>
      %cst_33 = arith.constant 1.000000e+00 : f32
      %116 = vector.broadcast %cst_33 : f32 to vector<32x128xf32>
      %117 = arith.subf %116, %112 : vector<32x128xf32>
      %118 = arith.mulf %117, %115 : vector<32x128xf32>
      %119 = arith.mulf %112, %95 : vector<32x128xf32>
      %120 = arith.addf %118, %119 : vector<32x128xf32>
      %121 = arith.mulf %120, %18 : vector<32x128xf32>
      %cst_34 = arith.constant dense<0.000000e+00> : vector<128xf32>
      %122 = vector.multi_reduction <add>, %121, %cst_34 [0] : vector<32x128xf32> to vector<128xf32>
      %123 = vector.shape_cast %122 : vector<128xf32> to vector<1x128xf32>
      %124 = arith.truncf %120 : vector<32x128xf32> to vector<32x128xbf16>
      %cst_35 = arith.constant dense<0.000000e+00> : vector<96x128xf32>
      %125 = tpu.matmul %15, %124, %cst_35 {dimension_numbers = #tpu.dot_dimension_numbers<[1], [0], [0], [1], [0, 0, 1, 1], [], []>} : vector<96x32xbf16>, vector<32x128xbf16>, vector<96x128xf32> -> vector<96x128xf32>
      %126 = vector.extract_strided_slice %125 {offsets = [0, 0], sizes = [32, 128], strides = [1, 1]} : vector<96x128xf32> to vector<32x128xf32>
      %127 = arith.negf %126 : vector<32x128xf32>
      %128 = math.exp %127 : vector<32x128xf32>
      %cst_36 = arith.constant 1.000000e+00 : f32
      %129 = vector.broadcast %cst_36 : f32 to vector<32x128xf32>
      %130 = arith.addf %129, %128 : vector<32x128xf32>
      %131 = arith.divf %129, %130 : vector<32x128xf32>
      %132 = vector.extract_strided_slice %125 {offsets = [32, 0], sizes = [32, 128], strides = [1, 1]} : vector<96x128xf32> to vector<32x128xf32>
      %133 = arith.negf %132 : vector<32x128xf32>
      %134 = math.exp %133 : vector<32x128xf32>
      %cst_37 = arith.constant 1.000000e+00 : f32
      %135 = vector.broadcast %cst_37 : f32 to vector<32x128xf32>
      %136 = arith.addf %135, %134 : vector<32x128xf32>
      %137 = arith.divf %135, %136 : vector<32x128xf32>
      %138 = vector.extract_strided_slice %125 {offsets = [64, 0], sizes = [32, 128], strides = [1, 1]} : vector<96x128xf32> to vector<32x128xf32>
      %139 = arith.mulf %131, %138 : vector<32x128xf32>
      %140 = math.tanh %139 : vector<32x128xf32>
      %cst_38 = arith.constant 1.000000e+00 : f32
      %141 = vector.broadcast %cst_38 : f32 to vector<32x128xf32>
      %142 = arith.subf %141, %137 : vector<32x128xf32>
      %143 = arith.mulf %142, %140 : vector<32x128xf32>
      %144 = arith.mulf %137, %120 : vector<32x128xf32>
      %145 = arith.addf %143, %144 : vector<32x128xf32>
      %146 = arith.mulf %145, %18 : vector<32x128xf32>
      %cst_39 = arith.constant dense<0.000000e+00> : vector<128xf32>
      %147 = vector.multi_reduction <add>, %146, %cst_39 [0] : vector<32x128xf32> to vector<128xf32>
      %148 = vector.shape_cast %147 : vector<128xf32> to vector<1x128xf32>
      %149 = arith.truncf %145 : vector<32x128xf32> to vector<32x128xbf16>
      %cst_40 = arith.constant dense<0.000000e+00> : vector<96x128xf32>
      %150 = tpu.matmul %15, %149, %cst_40 {dimension_numbers = #tpu.dot_dimension_numbers<[1], [0], [0], [1], [0, 0, 1, 1], [], []>} : vector<96x32xbf16>, vector<32x128xbf16>, vector<96x128xf32> -> vector<96x128xf32>
      %151 = vector.extract_strided_slice %150 {offsets = [0, 0], sizes = [32, 128], strides = [1, 1]} : vector<96x128xf32> to vector<32x128xf32>
      %152 = arith.negf %151 : vector<32x128xf32>
      %153 = math.exp %152 : vector<32x128xf32>
      %cst_41 = arith.constant 1.000000e+00 : f32
      %154 = vector.broadcast %cst_41 : f32 to vector<32x128xf32>
      %155 = arith.addf %154, %153 : vector<32x128xf32>
      %156 = arith.divf %154, %155 : vector<32x128xf32>
      %157 = vector.extract_strided_slice %150 {offsets = [32, 0], sizes = [32, 128], strides = [1, 1]} : vector<96x128xf32> to vector<32x128xf32>
      %158 = arith.negf %157 : vector<32x128xf32>
      %159 = math.exp %158 : vector<32x128xf32>
      %cst_42 = arith.constant 1.000000e+00 : f32
      %160 = vector.broadcast %cst_42 : f32 to vector<32x128xf32>
      %161 = arith.addf %160, %159 : vector<32x128xf32>
      %162 = arith.divf %160, %161 : vector<32x128xf32>
      %163 = vector.extract_strided_slice %150 {offsets = [64, 0], sizes = [32, 128], strides = [1, 1]} : vector<96x128xf32> to vector<32x128xf32>
      %164 = arith.mulf %156, %163 : vector<32x128xf32>
      %165 = math.tanh %164 : vector<32x128xf32>
      %cst_43 = arith.constant 1.000000e+00 : f32
      %166 = vector.broadcast %cst_43 : f32 to vector<32x128xf32>
      %167 = arith.subf %166, %162 : vector<32x128xf32>
      %168 = arith.mulf %167, %165 : vector<32x128xf32>
      %169 = arith.mulf %162, %145 : vector<32x128xf32>
      %170 = arith.addf %168, %169 : vector<32x128xf32>
      %171 = arith.mulf %170, %18 : vector<32x128xf32>
      %cst_44 = arith.constant dense<0.000000e+00> : vector<128xf32>
      %172 = vector.multi_reduction <add>, %171, %cst_44 [0] : vector<32x128xf32> to vector<128xf32>
      %173 = vector.shape_cast %172 : vector<128xf32> to vector<1x128xf32>
      %174 = arith.truncf %170 : vector<32x128xf32> to vector<32x128xbf16>
      %cst_45 = arith.constant dense<0.000000e+00> : vector<96x128xf32>
      %175 = tpu.matmul %15, %174, %cst_45 {dimension_numbers = #tpu.dot_dimension_numbers<[1], [0], [0], [1], [0, 0, 1, 1], [], []>} : vector<96x32xbf16>, vector<32x128xbf16>, vector<96x128xf32> -> vector<96x128xf32>
      %176 = vector.extract_strided_slice %175 {offsets = [0, 0], sizes = [32, 128], strides = [1, 1]} : vector<96x128xf32> to vector<32x128xf32>
      %177 = arith.negf %176 : vector<32x128xf32>
      %178 = math.exp %177 : vector<32x128xf32>
      %cst_46 = arith.constant 1.000000e+00 : f32
      %179 = vector.broadcast %cst_46 : f32 to vector<32x128xf32>
      %180 = arith.addf %179, %178 : vector<32x128xf32>
      %181 = arith.divf %179, %180 : vector<32x128xf32>
      %182 = vector.extract_strided_slice %175 {offsets = [32, 0], sizes = [32, 128], strides = [1, 1]} : vector<96x128xf32> to vector<32x128xf32>
      %183 = arith.negf %182 : vector<32x128xf32>
      %184 = math.exp %183 : vector<32x128xf32>
      %cst_47 = arith.constant 1.000000e+00 : f32
      %185 = vector.broadcast %cst_47 : f32 to vector<32x128xf32>
      %186 = arith.addf %185, %184 : vector<32x128xf32>
      %187 = arith.divf %185, %186 : vector<32x128xf32>
      %188 = vector.extract_strided_slice %175 {offsets = [64, 0], sizes = [32, 128], strides = [1, 1]} : vector<96x128xf32> to vector<32x128xf32>
      %189 = arith.mulf %181, %188 : vector<32x128xf32>
      %190 = math.tanh %189 : vector<32x128xf32>
      %cst_48 = arith.constant 1.000000e+00 : f32
      %191 = vector.broadcast %cst_48 : f32 to vector<32x128xf32>
      %192 = arith.subf %191, %187 : vector<32x128xf32>
      %193 = arith.mulf %192, %190 : vector<32x128xf32>
      %194 = arith.mulf %187, %170 : vector<32x128xf32>
      %195 = arith.addf %193, %194 : vector<32x128xf32>
      %196 = arith.mulf %195, %18 : vector<32x128xf32>
      %cst_49 = arith.constant dense<0.000000e+00> : vector<128xf32>
      %197 = vector.multi_reduction <add>, %196, %cst_49 [0] : vector<32x128xf32> to vector<128xf32>
      %198 = vector.shape_cast %197 : vector<128xf32> to vector<1x128xf32>
      %199 = arith.truncf %195 : vector<32x128xf32> to vector<32x128xbf16>
      %cst_50 = arith.constant dense<0.000000e+00> : vector<96x128xf32>
      %200 = tpu.matmul %15, %199, %cst_50 {dimension_numbers = #tpu.dot_dimension_numbers<[1], [0], [0], [1], [0, 0, 1, 1], [], []>} : vector<96x32xbf16>, vector<32x128xbf16>, vector<96x128xf32> -> vector<96x128xf32>
      %201 = vector.extract_strided_slice %200 {offsets = [0, 0], sizes = [32, 128], strides = [1, 1]} : vector<96x128xf32> to vector<32x128xf32>
      %202 = arith.negf %201 : vector<32x128xf32>
      %203 = math.exp %202 : vector<32x128xf32>
      %cst_51 = arith.constant 1.000000e+00 : f32
      %204 = vector.broadcast %cst_51 : f32 to vector<32x128xf32>
      %205 = arith.addf %204, %203 : vector<32x128xf32>
      %206 = arith.divf %204, %205 : vector<32x128xf32>
      %207 = vector.extract_strided_slice %200 {offsets = [32, 0], sizes = [32, 128], strides = [1, 1]} : vector<96x128xf32> to vector<32x128xf32>
      %208 = arith.negf %207 : vector<32x128xf32>
      %209 = math.exp %208 : vector<32x128xf32>
      %cst_52 = arith.constant 1.000000e+00 : f32
      %210 = vector.broadcast %cst_52 : f32 to vector<32x128xf32>
      %211 = arith.addf %210, %209 : vector<32x128xf32>
      %212 = arith.divf %210, %211 : vector<32x128xf32>
      %213 = vector.extract_strided_slice %200 {offsets = [64, 0], sizes = [32, 128], strides = [1, 1]} : vector<96x128xf32> to vector<32x128xf32>
      %214 = arith.mulf %206, %213 : vector<32x128xf32>
      %215 = math.tanh %214 : vector<32x128xf32>
      %cst_53 = arith.constant 1.000000e+00 : f32
      %216 = vector.broadcast %cst_53 : f32 to vector<32x128xf32>
      %217 = arith.subf %216, %212 : vector<32x128xf32>
      %218 = arith.mulf %217, %215 : vector<32x128xf32>
      %219 = arith.mulf %212, %195 : vector<32x128xf32>
      %220 = arith.addf %218, %219 : vector<32x128xf32>
      %221 = arith.mulf %220, %18 : vector<32x128xf32>
      %cst_54 = arith.constant dense<0.000000e+00> : vector<128xf32>
      %222 = vector.multi_reduction <add>, %221, %cst_54 [0] : vector<32x128xf32> to vector<128xf32>
      %223 = vector.shape_cast %222 : vector<128xf32> to vector<1x128xf32>
      %224 = tpu.concatenate %48, %73, %98, %123, %148, %173, %198, %223 in 0 : vector<1x128xf32>, vector<1x128xf32>, vector<1x128xf32>, vector<1x128xf32>, vector<1x128xf32>, vector<1x128xf32>, vector<1x128xf32>, vector<1x128xf32> -> vector<8x128xf32>
      %c8_i32 = arith.constant 8 : i32
      %225 = arith.muli %arg8, %c8_i32 : i32
      %226 = tpu.assume_multiple %225, 8 : i32
      %227 = arith.addf %224, %21 : vector<8x128xf32>
      %228 = arith.negf %227 : vector<8x128xf32>
      %229 = math.exp %228 : vector<8x128xf32>
      %cst_55 = arith.constant 1.000000e+00 : f32
      %230 = vector.broadcast %cst_55 : f32 to vector<8x128xf32>
      %231 = arith.addf %230, %229 : vector<8x128xf32>
      %232 = arith.divf %230, %231 : vector<8x128xf32>
      %233 = arith.index_cast %226 : i32 to index
      %c0_56 = arith.constant 0 : index
      %234 = vector.load %arg7[%233, %c0_56] : memref<1024x128xf32, #tpu.memory_space<vmem>>, vector<8x128xf32>
      tpu.vector_store %arg7[%233, %c0_56], %232 {strides = array<i32>} : memref<1024x128xf32, #tpu.memory_space<vmem>>, vector<8x128xf32>,
      scf.yield %220 : vector<32x128xf32>
    }
    %c128_i32_14 = arith.constant 128 : i32
    return
  }
  func.func @transform_0(%arg0: i32) -> (i32, i32) {
    %c0_i32 = arith.constant 0 : i32
    %c0_i32_0 = arith.constant 0 : i32
    return %c0_i32, %arg0 : i32, i32
  }
  func.func @transform_1(%arg0: i32) -> (i32, i32) {
    %c0_i32 = arith.constant 0 : i32
    %c0_i32_0 = arith.constant 0 : i32
    %c0_i32_1 = arith.constant 0 : i32
    return %c0_i32, %c0_i32_0 : i32, i32
  }
  func.func @transform_2(%arg0: i32) -> (i32, i32) {
    %c0_i32 = arith.constant 0 : i32
    %c0_i32_0 = arith.constant 0 : i32
    %c0_i32_1 = arith.constant 0 : i32
    return %c0_i32, %c0_i32_0 : i32, i32
  }
  func.func @transform_3(%arg0: i32) -> (i32, i32) {
    %c0_i32 = arith.constant 0 : i32
    %c0_i32_0 = arith.constant 0 : i32
    %c0_i32_1 = arith.constant 0 : i32
    return %c0_i32, %c0_i32_0 : i32, i32
  }
  func.func @transform_4(%arg0: i32) -> (i32, i32) {
    %c0_i32 = arith.constant 0 : i32
    %c0_i32_0 = arith.constant 0 : i32
    %c0_i32_1 = arith.constant 0 : i32
    return %c0_i32, %c0_i32_0 : i32, i32
  }
  func.func @transform_5(%arg0: i32) -> (i32, i32) {
    %c0_i32 = arith.constant 0 : i32
    %c0_i32_0 = arith.constant 0 : i32
    %c0_i32_1 = arith.constant 0 : i32
    return %c0_i32, %c0_i32_0 : i32, i32
  }
  func.func @transform_6(%arg0: i32) -> (i32, i32) {
    %c0_i32 = arith.constant 0 : i32
    %c0_i32_0 = arith.constant 0 : i32
    return %c0_i32, %arg0 : i32, i32
  }
}

</mosaic_0001>

<llo_original>
// kernel: tpu_custom_call.1
$region0: #{tpu_custom_call.1}
  #allocation0 [shape = 'u32[]', space=smem, size = 0x4, offset = 0x4, fixed_abs, tag = 'smem constant byte address 0x4 - core index']
  #allocation1 [shape = 'u32[144,128]{1,0:T(1,128)}', space=vmem, size = 0x12000, scoped, tag = 'internal scratch']
  #allocation2 [shape = 'f32[1,1]{1,0:T(1,128)S(1)}', space=vmem, size = 0x200, scoped, tag = 'scoped memory for tpu_custom_call.1']
  %s0 = inlined_call_operand.vmem [shape: f32[8,128], index: 0, kind: input, shape index: {}]
  %s1 = inlined_call_operand.vmem [shape: f32[32,8], index: 1, kind: input, shape index: {}]
  %s2 = inlined_call_operand.vmem [shape: f32[32,1], index: 2, kind: input, shape index: {}]
  %s3 = inlined_call_operand.vmem [shape: bf16[96,32], index: 3, kind: input, shape index: {}]
  %s4 = inlined_call_operand.vmem [shape: f32[32,1], index: 4, kind: input, shape index: {}]
  %s5 = inlined_call_operand.<no memory space> [shape: f32[1,1], index: 5, kind: input, shape index: {}]
  %s6 = inlined_call_operand.hbm [shape: f32[1024,128], index: 6, kind: output, shape index: {}]
  %s7 = sld [smem:[#allocation0]]
  $region41: #{tpu_custom_call.1} parent=0
    _
  %s9 = ssub.s32 1, %s7
  %s10 = scalar_select 0, %s9, %s7
  %v11 = vstv %s5
  %12 = vst [vmem:[#allocation2] sm:$0x1] %v11
  $region1: #{tpu_custom_call.1} parent=0
    #allocation3 [shape = 'u8[524288]{0}', space=vmem, size = 0x80000, scoped, tag = 'output window, operand 0, single buffered']
    #allocation4 [shape = 's32[1]{0}', space=sflag, size = 0x4, scoped, tag = 'scoped memory for tpu_custom_call.1']
    %13 = vsyncpa [#allocation4], 0
    // Predicated region
    $region2: #{tpu_custom_call.1} parent=1 // pred_check
      _
    $region3: #{tpu_custom_call.1} parent=1 // pred_check_branch
      %15 = sbr.rel (0) target = $region5
    $region4: #{tpu_custom_call.1} parent=1 // pred_region
      _
    $region5: #{tpu_custom_call.1} parent=1 // pred_fallthru
      _
    // Predicated region
    $region6: #{tpu_custom_call.1} parent=1 // pred_check
      _
    $region7: #{tpu_custom_call.1} parent=1 // pred_check_branch
      %17 = sbr.rel (0) target = $region9
    $region8: #{tpu_custom_call.1} parent=1 // pred_region
      _
    $region9: #{tpu_custom_call.1} parent=1 // pred_fallthru
      _
    // Predicated region
    $region10: #{tpu_custom_call.1} parent=1 // pred_check
      _
    $region11: #{tpu_custom_call.1} parent=1 // pred_check_branch
      %19 = sbr.rel (0) target = $region13
    $region12: #{tpu_custom_call.1} parent=1 // pred_region
      _
    $region13: #{tpu_custom_call.1} parent=1 // pred_fallthru
      _
    // Predicated region
    $region14: #{tpu_custom_call.1} parent=1 // pred_check
      _
    $region15: #{tpu_custom_call.1} parent=1 // pred_check_branch
      %21 = sbr.rel (0) target = $region17
    $region16: #{tpu_custom_call.1} parent=1 // pred_region
      _
    $region17: #{tpu_custom_call.1} parent=1 // pred_fallthru
      _
    // Predicated region
    $region18: #{tpu_custom_call.1} parent=1 // pred_check
      _
    $region19: #{tpu_custom_call.1} parent=1 // pred_check_branch
      %23 = sbr.rel (0) target = $region21
    $region20: #{tpu_custom_call.1} parent=1 // pred_region
      _
    $region21: #{tpu_custom_call.1} parent=1 // pred_fallthru
      _
    // Predicated region
    $region22: #{tpu_custom_call.1} parent=1 // pred_check
      _
    $region23: #{tpu_custom_call.1} parent=1 // pred_check_branch
      %25 = sbr.rel (0) target = $region25
    $region24: #{tpu_custom_call.1} parent=1 // pred_region
      _
    $region25: #{tpu_custom_call.1} parent=1 // pred_fallthru
      _
    %v27 = vld [vmem:[%s1] sm:$0xff]
    %v28 = vld [vmem:[%s1 + $0x8] sm:$0xff]
    %v29 = vld [vmem:[%s1 + $0x10] sm:$0xff]
    %v30 = vld [vmem:[%s1 + $0x18] sm:$0xff]
    %v31 = vld [vmem:[%s0] sm:$0xff]
    %v32 = vld [vmem:[%s2] sm:$0xff]
    %v33 = vld [vmem:[%s2 + $0x8] sm:$0xff]
    %v34 = vld [vmem:[%s2 + $0x10] sm:$0xff]
    %v35 = vld [vmem:[%s2 + $0x18] sm:$0xff]
    %37 = vset.pattern.permute.xlu0 0
    %38 = vperm.xlu0 %37, %v32
    %v39 = vpop.permute.xlu0 %38
    %42 = vset.pattern.permute.xlu0 0
    %43 = vperm.xlu0 %42, %v33
    %v44 = vpop.permute.xlu0 %43
    %47 = vset.pattern.permute.xlu0 0
    %48 = vperm.xlu0 %47, %v34
    %v49 = vpop.permute.xlu0 %48
    %52 = vset.pattern.permute.xlu0 0
    %53 = vperm.xlu0 %52, %v35
    %v54 = vpop.permute.xlu0 %53
    %vm56 = vcmask 64512
    %v58 = vsel %vm56, %v27, 0
    %v61 = vsel %vm56, %v28, 0
    %v64 = vsel %vm56, %v29, 0
    %v67 = vsel %vm56, %v30, 0
    %69 = vmatprep.subr.mxu0 0.0
    %70 = vmatpush1.msra.mxu0 %v31
    %71 = vmatprep.subr.mxu0 0.0
    %72 = vmatpush1.msra.mxu0 0.0
    %73 = vmatprep.subr.mxu0 0.0
    %74 = vmatpush1.msra.mxu0 0.0
    %75 = vmatprep.subr.mxu0 0.0
    %76 = vmatpush1.msra.mxu0 0.0
    %77 = vmatprep.subr.mxu0 0.0
    %78 = vmatpush1.msra.mxu0 0.0
    %79 = vmatprep.subr.mxu0 0.0
    %80 = vmatpush1.msra.mxu0 0.0
    %81 = vmatprep.subr.mxu0 0.0
    %82 = vmatpush1.msra.mxu0 0.0
    %83 = vmatprep.subr.mxu0 0.0
    %84 = vmatpush1.msra.mxu0 0.0
    %85 = vmatprep.subr.mxu0 0.0
    %86 = vmatpush1.msra.mxu0 0.0
    %87 = vmatprep.subr.mxu0 0.0
    %88 = vmatpush1.msra.mxu0 0.0
    %89 = vmatprep.subr.mxu0 0.0
    %90 = vmatpush1.msra.mxu0 0.0
    %91 = vmatprep.subr.mxu0 0.0
    %92 = vmatpush1.msra.mxu0 0.0
    %93 = vmatprep.subr.mxu0 0.0
    %94 = vmatpush1.msra.mxu0 0.0
    %95 = vmatprep.subr.mxu0 0.0
    %96 = vmatpush1.msra.mxu0 0.0
    %97 = vmatprep.subr.mxu0 0.0
    %98 = vmatpush1.msra.mxu0 0.0
    %99 = vmatprep.subr.mxu0 0.0
    %100 = vmatpush1.msra.mxu0 0.0
    %101 = vmatprep.subr.mxu0 0.0
    %102 = vmatpush1.msra.mxu0 0.0
    %103 = vmatprep.subr.mxu0 0.0
    %104 = vmatpush1.msra.mxu0 0.0
    %105 = vmatprep.subr.mxu0 0.0
    %106 = vmatpush1.msra.mxu0 0.0
    %107 = vmatprep.subr.mxu0 0.0
    %108 = vmatpush1.msra.mxu0 0.0
    %109 = vmatprep.subr.mxu0 0.0
    %110 = vmatpush1.msra.mxu0 0.0
    %111 = vmatprep.subr.mxu0 0.0
    %112 = vmatpush1.msra.mxu0 0.0
    %113 = vmatprep.subr.mxu0 0.0
    %114 = vmatpush1.msra.mxu0 0.0
    %115 = vmatprep.subr.mxu0 0.0
    %116 = vmatpush1.msra.mxu0 0.0
    %117 = vmatprep.subr.mxu0 0.0
    %118 = vmatpush1.msra.mxu0 0.0
    %119 = vmatprep.subr.mxu0 0.0
    %120 = vmatpush1.msra.mxu0 0.0
    %121 = vmatprep.subr.mxu0 0.0
    %122 = vmatpush1.msra.mxu0 0.0
    %123 = vmatprep.subr.mxu0 0.0
    %124 = vmatpush1.msra.mxu0 0.0
    %125 = vmatprep.subr.mxu0 0.0
    %126 = vmatpush1.msra.mxu0 0.0
    %127 = vmatprep.subr.mxu0 0.0
    %128 = vmatpush1.msra.mxu0 0.0
    %129 = vmatprep.subr.mxu0 0.0
    %130 = vmatpush1.msra.mxu0 0.0
    %131 = vmatprep.subr.mxu0 0.0
    %132 = vmatpush1.msra.mxu0 0.0
    %133 = vmatprep.mubr.f32.mxu0 0.0
    %134 = vmatmul.mubr.f32.gmra.mrb[0].mxu0 %v58
    %v135 = vpop.f32.mrb[0].mxu0
    %v136 = vadd.f32 %v39, %v135
    %v137 = vpop.f32.mrb[0].mxu0
    %138 = vmatprep.mubr.f32.mxu0 0.0
    %139 = vmatmul.mubr.f32.gmra.mrb[0].mxu0 %v61
    %v140 = vpop.f32.mrb[0].mxu0
    %v141 = vadd.f32 %v44, %v140
    %v142 = vpop.f32.mrb[0].mxu0
    %143 = vmatprep.mubr.f32.mxu0 0.0
    %144 = vmatmul.mubr.f32.gmra.mrb[0].mxu0 %v64
    %v145 = vpop.f32.mrb[0].mxu0
    %v146 = vadd.f32 %v49, %v145
    %v147 = vpop.f32.mrb[0].mxu0
    %148 = vmatprep.mubr.f32.mxu0 0.0
    %149 = vmatmul.mubr.f32.gmra.mrb[0].mxu0 %v67
    %v150 = vpop.f32.mrb[0].mxu0
    %v151 = vadd.f32 %v54, %v150
    %v152 = vpop.f32.mrb[0].mxu0
    %153 = vdwg.mxu0
    %vm154 = vcmp.gt.f32.partialorder %v136, 20.0
    %vm155 = vcmp.gt.f32.partialorder %v141, 20.0
    %vm156 = vcmp.gt.f32.partialorder %v146, 20.0
    %vm157 = vcmp.gt.f32.partialorder %v151, 20.0
    %v158 = vmin.f32 %v136, 20.0
    %v159 = vmin.f32 %v141, 20.0
    %v160 = vmin.f32 %v146, 20.0
    %v161 = vmin.f32 %v151, 20.0
    %v162 = vmul.f32 %v158, 1.442695
    %v163 = vpow.pop %v162
    %v164 = vmul.f32 %v159, 1.442695
    %v165 = vpow.pop %v164
    %v166 = vmul.f32 %v160, 1.442695
    %v167 = vpow.pop %v166
    %v168 = vmul.f32 %v161, 1.442695
    %v169 = vpow.pop %v168
    %v170 = vadd.f32 %v163, 1.0
    %v171 = vadd.f32 %v165, 1.0
    %v172 = vadd.f32 %v167, 1.0
    %v173 = vadd.f32 %v169, 1.0
    %v174 = vlog2.pop %v170
    %v175 = vmul.f32 %v174, 0.6931472
    %v176 = vlog2.pop %v171
    %v177 = vmul.f32 %v176, 0.6931472
    %v178 = vlog2.pop %v172
    %v179 = vmul.f32 %v178, 0.6931472
    %v180 = vlog2.pop %v173
    %v181 = vmul.f32 %v180, 0.6931472
    %v182 = vsel %vm154, %v136, %v175
    %v183 = vsel %vm155, %v141, %v177
    %v184 = vsel %vm156, %v146, %v179
    %v185 = vsel %vm157, %v151, %v181
    %v186 = vld [vmem:[%s3] sm:$0xf]
    %v187 = vld [vmem:[%s3 + $0x4] sm:$0xf]
    %v188 = vld [vmem:[%s3 + $0x8] sm:$0xf]
    %v189 = vld [vmem:[%s3 + $0xc] sm:$0xf]
    %v190 = vld [vmem:[%s3 + $0x10] sm:$0xf]
    %v191 = vld [vmem:[%s3 + $0x14] sm:$0xf]
    %v192 = vld [vmem:[%s3 + $0x18] sm:$0xf]
    %v193 = vld [vmem:[%s3 + $0x1c] sm:$0xf]
    %v194 = vld [vmem:[%s3 + $0x20] sm:$0xf]
    %v195 = vld [vmem:[%s3 + $0x24] sm:$0xf]
    %v196 = vld [vmem:[%s3 + $0x28] sm:$0xf]
    %v197 = vld [vmem:[%s3 + $0x2c] sm:$0xf]
    %v198 = vld [vmem:[%s4] sm:$0xff]
    %v199 = vld [vmem:[%s4 + $0x8] sm:$0xff]
    %v200 = vld [vmem:[%s4 + $0x10] sm:$0xff]
    %v201 = vld [vmem:[%s4 + $0x18] sm:$0xff]
    %203 = vset.pattern.permute.xlu0 0
    %204 = vperm.xlu0 %203, %v198
    %v205 = vpop.permute.xlu0 %204
    %208 = vset.pattern.permute.xlu0 0
    %209 = vperm.xlu0 %208, %v199
    %v210 = vpop.permute.xlu0 %209
    %213 = vset.pattern.permute.xlu0 0
    %214 = vperm.xlu0 %213, %v200
    %v215 = vpop.permute.xlu0 %214
    %218 = vset.pattern.permute.xlu0 0
    %219 = vperm.xlu0 %218, %v201
    %v220 = vpop.permute.xlu0 %219
    %v222 = vld [vmem:[#allocation2] sm:$0x1]
    %v224 = vlaneseq
    %v225 = vshrl.u32 %v224, 7
    %v226 = vsub.s32 0, %v225
    %v227 = vrot.slane %v222, %v226
    %228 = vset.pattern.permute.xlu0 0
    %229 = vperm.xlu0 %228, %v227
    %v230 = vpop.permute.xlu0 %229
    loop: start=0, step=1, limit=128
    $region26: #{tpu_custom_call.1} parent=1 // loop_pre_header
      _
    $region27: #{tpu_custom_call.1} parent=1 // loop_header
      %s233 = sphi 0, %s237
      %p234 = scmp.ge.s32.totalorder %s233, 128
      %v238 = vphi %v182, %v1618
      %v239 = vphi %v183, %v1619
      %v240 = vphi %v184, %v1620
      %v241 = vphi %v185, %v1621
    $region28: #{tpu_custom_call.1} parent=1 // loop_header_branch
      %236 = sbr.rel (%p234) target = $region32
    $region29: #{tpu_custom_call.1} parent=1 // loop_body
      %v242 = vpack.c.bf16 %v239, %v238
      %v243 = vpack.c.bf16 %v241, %v240
      %v256 = vunpack.c.l.b16 %v186
      %v257 = vunpack.c.l.b16 %v187
      %v258 = vunpack.c.l.b16 %v188
      %v259 = vunpack.c.l.b16 %v189
      %v260 = vunpack.c.l.b16 %v190
      %v261 = vunpack.c.l.b16 %v191
      %v262 = vunpack.c.l.b16 %v192
      %v263 = vunpack.c.l.b16 %v193
      %v264 = vunpack.c.l.b16 %v194
      %v265 = vunpack.c.l.b16 %v195
      %v266 = vunpack.c.l.b16 %v196
      %v267 = vunpack.c.l.b16 %v197
      %v268 = vpack.c.b16 %v257, %v256
      %v269 = vpack.c.b16 %v259, %v258
      %v270 = vpack.c.b16 %v261, %v260
      %v271 = vpack.c.b16 %v263, %v262
      %v272 = vpack.c.b16 %v265, %v264
      %v273 = vpack.c.b16 %v267, %v266
      %vm274 = vcmask 261120
      %v276 = vsel %vm274, %v268, 0
      %v279 = vsel %vm274, %v269, 0
      %v282 = vsel %vm274, %v270, 0
      %v285 = vsel %vm274, %v271, 0
      %v288 = vsel %vm274, %v272, 0
      %v291 = vsel %vm274, %v273, 0
      %293 = vmatprep.subr.bf16.mxu0 0
      %294 = vmatpush1.bf16.msra.mxu0 %v242
      %295 = vmatprep.subr.bf16.mxu0 0
      %296 = vmatpush1.bf16.msra.mxu0 %v243
      %297 = vmatprep.subr.bf16.mxu0 0
      %298 = vmatpush1.bf16.msra.mxu0 0
      %299 = vmatprep.subr.bf16.mxu0 0
      %300 = vmatpush1.bf16.msra.mxu0 0
      %301 = vmatprep.subr.bf16.mxu0 0
      %302 = vmatpush1.bf16.msra.mxu0 0
      %303 = vmatprep.subr.bf16.mxu0 0
      %304 = vmatpush1.bf16.msra.mxu0 0
      %305 = vmatprep.subr.bf16.mxu0 0
      %306 = vmatpush1.bf16.msra.mxu0 0
      %307 = vmatprep.subr.bf16.mxu0 0
      %308 = vmatpush1.bf16.msra.mxu0 0
      %309 = vmatprep.subr.bf16.mxu0 0
      %310 = vmatpush1.bf16.msra.mxu0 0
      %311 = vmatprep.subr.bf16.mxu0 0
      %312 = vmatpush1.bf16.msra.mxu0 0
      %313 = vmatprep.subr.bf16.mxu0 0
      %314 = vmatpush1.bf16.msra.mxu0 0
      %315 = vmatprep.subr.bf16.mxu0 0
      %316 = vmatpush1.bf16.msra.mxu0 0
      %317 = vmatprep.subr.bf16.mxu0 0
      %318 = vmatpush1.bf16.msra.mxu0 0
      %319 = vmatprep.subr.bf16.mxu0 0
      %320 = vmatpush1.bf16.msra.mxu0 0
      %321 = vmatprep.subr.bf16.mxu0 0
      %322 = vmatpush1.bf16.msra.mxu0 0
      %323 = vmatprep.subr.bf16.mxu0 0
      %324 = vmatpush1.bf16.msra.mxu0 0
      %325 = vmatprep.mubr.bf16.mxu0 0
      %326 = vmatmul.mubr.bf16.gmra.mrb[0].mxu0 %v276
      %v327 = vpop.f32.mrb[0].mxu0
      %v328 = vadd.f32 0.0, %v327
      %v329 = vpop.f32.mrb[0].mxu0
      %v330 = vpop.f32.mrb[0].mxu0
      %v331 = vadd.f32 0.0, %v330
      %v332 = vpop.f32.mrb[0].mxu0
      %333 = vmatprep.mubr.bf16.mxu0 0
      %334 = vmatmul.mubr.bf16.gmra.mrb[0].mxu0 %v279
      %v335 = vpop.f32.mrb[0].mxu0
      %v336 = vadd.f32 0.0, %v335
      %v337 = vpop.f32.mrb[0].mxu0
      %v338 = vpop.f32.mrb[0].mxu0
      %v339 = vadd.f32 0.0, %v338
      %v340 = vpop.f32.mrb[0].mxu0
      %341 = vmatprep.mubr.bf16.mxu0 0
      %342 = vmatmul.mubr.bf16.gmra.mrb[0].mxu0 %v282
      %v343 = vpop.f32.mrb[0].mxu0
      %v344 = vadd.f32 0.0, %v343
      %v345 = vpop.f32.mrb[0].mxu0
      %v346 = vpop.f32.mrb[0].mxu0
      %v347 = vadd.f32 0.0, %v346
      %v348 = vpop.f32.mrb[0].mxu0
      %349 = vmatprep.mubr.bf16.mxu0 0
      %350 = vmatmul.mubr.bf16.gmra.mrb[0].mxu0 %v285
      %v351 = vpop.f32.mrb[0].mxu0
      %v352 = vadd.f32 0.0, %v351
      %v353 = vpop.f32.mrb[0].mxu0
      %v354 = vpop.f32.mrb[0].mxu0
      %v355 = vadd.f32 0.0, %v354
      %v356 = vpop.f32.mrb[0].mxu0
      %357 = vmatprep.mubr.bf16.mxu0 0
      %358 = vmatmul.mubr.bf16.gmra.mrb[0].mxu0 %v288
      %v359 = vpop.f32.mrb[0].mxu0
      %v360 = vadd.f32 0.0, %v359
      %v361 = vpop.f32.mrb[0].mxu0
      %v362 = vpop.f32.mrb[0].mxu0
      %v363 = vadd.f32 0.0, %v362
      %v364 = vpop.f32.mrb[0].mxu0
      %365 = vmatprep.mubr.bf16.mxu0 0
      %366 = vmatmul.mubr.bf16.gmra.mrb[0].mxu0 %v291
      %v367 = vpop.f32.mrb[0].mxu0
      %v368 = vadd.f32 0.0, %v367
      %v369 = vpop.f32.mrb[0].mxu0
      %v370 = vpop.f32.mrb[0].mxu0
      %v371 = vadd.f32 0.0, %v370
      %v372 = vpop.f32.mrb[0].mxu0
      %373 = vdwg.mxu0
      %v374 = vxor.u32 %v328, 2147483648
      %v375 = vxor.u32 %v331, 2147483648
      %v376 = vxor.u32 %v336, 2147483648
      %v377 = vxor.u32 %v339, 2147483648
      %v378 = vmul.f32 %v374, 1.442695
      %v379 = vpow.pop %v378
      %v380 = vmul.f32 %v375, 1.442695
      %v381 = vpow.pop %v380
      %v382 = vmul.f32 %v376, 1.442695
      %v383 = vpow.pop %v382
      %v384 = vmul.f32 %v377, 1.442695
      %v385 = vpow.pop %v384
      %v386 = vadd.f32 %v379, 1.0
      %v387 = vadd.f32 %v381, 1.0
      %v388 = vadd.f32 %v383, 1.0
      %v389 = vadd.f32 %v385, 1.0
      %v390 = vrcp.pop %v386
      %v391 = vmul.f32 1.0, %v390
      %v392 = vrcp.pop %v387
      %v393 = vmul.f32 1.0, %v392
      %v394 = vrcp.pop %v388
      %v395 = vmul.f32 1.0, %v394
      %v396 = vrcp.pop %v389
      %v397 = vmul.f32 1.0, %v396
      %v398 = vxor.u32 %v344, 2147483648
      %v399 = vxor.u32 %v347, 2147483648
      %v400 = vxor.u32 %v352, 2147483648
      %v401 = vxor.u32 %v355, 2147483648
      %v402 = vmul.f32 %v398, 1.442695
      %v403 = vpow.pop %v402
      %v404 = vmul.f32 %v399, 1.442695
      %v405 = vpow.pop %v404
      %v406 = vmul.f32 %v400, 1.442695
      %v407 = vpow.pop %v406
      %v408 = vmul.f32 %v401, 1.442695
      %v409 = vpow.pop %v408
      %v410 = vadd.f32 %v403, 1.0
      %v411 = vadd.f32 %v405, 1.0
      %v412 = vadd.f32 %v407, 1.0
      %v413 = vadd.f32 %v409, 1.0
      %v414 = vrcp.pop %v410
      %v415 = vmul.f32 1.0, %v414
      %v416 = vrcp.pop %v411
      %v417 = vmul.f32 1.0, %v416
      %v418 = vrcp.pop %v412
      %v419 = vmul.f32 1.0, %v418
      %v420 = vrcp.pop %v413
      %v421 = vmul.f32 1.0, %v420
      %v422 = vmul.f32 %v391, %v360
      %v423 = vmul.f32 %v393, %v363
      %v424 = vmul.f32 %v395, %v368
      %v425 = vmul.f32 %v397, %v371
      %v426 = vtanh.pop %v422
      %v427 = vtanh.pop %v423
      %v428 = vtanh.pop %v424
      %v429 = vtanh.pop %v425
      %v430 = vsub.f32 1.0, %v415
      %v431 = vsub.f32 1.0, %v417
      %v432 = vsub.f32 1.0, %v419
      %v433 = vsub.f32 1.0, %v421
      %v434 = vmul.f32 %v430, %v426
      %v435 = vmul.f32 %v431, %v427
      %v436 = vmul.f32 %v432, %v428
      %v437 = vmul.f32 %v433, %v429
      %v438 = vmul.f32 %v415, %v238
      %v439 = vmul.f32 %v417, %v239
      %v440 = vmul.f32 %v419, %v240
      %v441 = vmul.f32 %v421, %v241
      %v442 = vadd.f32 %v434, %v438
      %v443 = vadd.f32 %v435, %v439
      %v444 = vadd.f32 %v436, %v440
      %v445 = vadd.f32 %v437, %v441
      %v446 = vmul.f32 %v442, %v205
      %v447 = vmul.f32 %v443, %v210
      %v448 = vmul.f32 %v444, %v215
      %v449 = vmul.f32 %v445, %v220
      %v450 = vadd.f32 %v446, %v447
      %v451 = vadd.f32 %v450, %v448
      %v452 = vadd.f32 %v451, %v449
      %v453 = vrot.slane %v452, 4
      %v454 = vadd.f32 %v452, %v453
      %v455 = vrot.slane %v454, 2
      %v456 = vadd.f32 %v454, %v455
      %v457 = vrot.slane %v456, 1
      %v458 = vadd.f32 %v456, %v457
      %v459 = vpack.c.bf16 %v443, %v442
      %v460 = vpack.c.bf16 %v445, %v444
      %461 = vmatprep.subr.bf16.mxu0 0
      %462 = vmatpush1.bf16.msra.mxu0 %v459
      %463 = vmatprep.subr.bf16.mxu0 0
      %464 = vmatpush1.bf16.msra.mxu0 %v460
      %465 = vmatprep.subr.bf16.mxu0 0
      %466 = vmatpush1.bf16.msra.mxu0 0
      %467 = vmatprep.subr.bf16.mxu0 0
      %468 = vmatpush1.bf16.msra.mxu0 0
      %469 = vmatprep.subr.bf16.mxu0 0
      %470 = vmatpush1.bf16.msra.mxu0 0
      %471 = vmatprep.subr.bf16.mxu0 0
      %472 = vmatpush1.bf16.msra.mxu0 0
      %473 = vmatprep.subr.bf16.mxu0 0
      %474 = vmatpush1.bf16.msra.mxu0 0
      %475 = vmatprep.subr.bf16.mxu0 0
      %476 = vmatpush1.bf16.msra.mxu0 0
      %477 = vmatprep.subr.bf16.mxu0 0
      %478 = vmatpush1.bf16.msra.mxu0 0
      %479 = vmatprep.subr.bf16.mxu0 0
      %480 = vmatpush1.bf16.msra.mxu0 0
      %481 = vmatprep.subr.bf16.mxu0 0
      %482 = vmatpush1.bf16.msra.mxu0 0
      %483 = vmatprep.subr.bf16.mxu0 0
      %484 = vmatpush1.bf16.msra.mxu0 0
      %485 = vmatprep.subr.bf16.mxu0 0
      %486 = vmatpush1.bf16.msra.mxu0 0
      %487 = vmatprep.subr.bf16.mxu0 0
      %488 = vmatpush1.bf16.msra.mxu0 0
      %489 = vmatprep.subr.bf16.mxu0 0
      %490 = vmatpush1.bf16.msra.mxu0 0
      %491 = vmatprep.subr.bf16.mxu0 0
      %492 = vmatpush1.bf16.msra.mxu0 0
      %493 = vmatprep.mubr.bf16.mxu0 0
      %494 = vmatmul.mubr.bf16.gmra.mrb[0].mxu0 %v276
      %v495 = vpop.f32.mrb[0].mxu0
      %v496 = vadd.f32 0.0, %v495
      %v497 = vpop.f32.mrb[0].mxu0
      %v498 = vpop.f32.mrb[0].mxu0
      %v499 = vadd.f32 0.0, %v498
      %v500 = vpop.f32.mrb[0].mxu0
      %501 = vmatprep.mubr.bf16.mxu0 0
      %502 = vmatmul.mubr.bf16.gmra.mrb[0].mxu0 %v279
      %v503 = vpop.f32.mrb[0].mxu0
      %v504 = vadd.f32 0.0, %v503
      %v505 = vpop.f32.mrb[0].mxu0
      %v506 = vpop.f32.mrb[0].mxu0
      %v507 = vadd.f32 0.0, %v506
      %v508 = vpop.f32.mrb[0].mxu0
      %509 = vmatprep.mubr.bf16.mxu0 0
      %510 = vmatmul.mubr.bf16.gmra.mrb[0].mxu0 %v282
      %v511 = vpop.f32.mrb[0].mxu0
      %v512 = vadd.f32 0.0, %v511
      %v513 = vpop.f32.mrb[0].mxu0
      %v514 = vpop.f32.mrb[0].mxu0
      %v515 = vadd.f32 0.0, %v514
      %v516 = vpop.f32.mrb[0].mxu0
      %517 = vmatprep.mubr.bf16.mxu0 0
      %518 = vmatmul.mubr.bf16.gmra.mrb[0].mxu0 %v285
      %v519 = vpop.f32.mrb[0].mxu0
      %v520 = vadd.f32 0.0, %v519
      %v521 = vpop.f32.mrb[0].mxu0
      %v522 = vpop.f32.mrb[0].mxu0
      %v523 = vadd.f32 0.0, %v522
      %v524 = vpop.f32.mrb[0].mxu0
      %525 = vmatprep.mubr.bf16.mxu0 0
      %526 = vmatmul.mubr.bf16.gmra.mrb[0].mxu0 %v288
      %v527 = vpop.f32.mrb[0].mxu0
      %v528 = vadd.f32 0.0, %v527
      %v529 = vpop.f32.mrb[0].mxu0
      %v530 = vpop.f32.mrb[0].mxu0
      %v531 = vadd.f32 0.0, %v530
      %v532 = vpop.f32.mrb[0].mxu0
      %533 = vmatprep.mubr.bf16.mxu0 0
      %534 = vmatmul.mubr.bf16.gmra.mrb[0].mxu0 %v291
      %v535 = vpop.f32.mrb[0].mxu0
      %v536 = vadd.f32 0.0, %v535
      %v537 = vpop.f32.mrb[0].mxu0
      %v538 = vpop.f32.mrb[0].mxu0
      %v539 = vadd.f32 0.0, %v538
      %v540 = vpop.f32.mrb[0].mxu0
      %541 = vdwg.mxu0
      %v542 = vxor.u32 %v496, 2147483648
      %v543 = vxor.u32 %v499, 2147483648
      %v544 = vxor.u32 %v504, 2147483648
      %v545 = vxor.u32 %v507, 2147483648
      %v546 = vmul.f32 %v542, 1.442695
      %v547 = vpow.pop %v546
      %v548 = vmul.f32 %v543, 1.442695
      %v549 = vpow.pop %v548
      %v550 = vmul.f32 %v544, 1.442695
      %v551 = vpow.pop %v550
      %v552 = vmul.f32 %v545, 1.442695
      %v553 = vpow.pop %v552
      %v554 = vadd.f32 %v547, 1.0
      %v555 = vadd.f32 %v549, 1.0
      %v556 = vadd.f32 %v551, 1.0
      %v557 = vadd.f32 %v553, 1.0
      %v558 = vrcp.pop %v554
      %v559 = vmul.f32 1.0, %v558
      %v560 = vrcp.pop %v555
      %v561 = vmul.f32 1.0, %v560
      %v562 = vrcp.pop %v556
      %v563 = vmul.f32 1.0, %v562
      %v564 = vrcp.pop %v557
      %v565 = vmul.f32 1.0, %v564
      %v566 = vxor.u32 %v512, 2147483648
      %v567 = vxor.u32 %v515, 2147483648
      %v568 = vxor.u32 %v520, 2147483648
      %v569 = vxor.u32 %v523, 2147483648
      %v570 = vmul.f32 %v566, 1.442695
      %v571 = vpow.pop %v570
      %v572 = vmul.f32 %v567, 1.442695
      %v573 = vpow.pop %v572
      %v574 = vmul.f32 %v568, 1.442695
      %v575 = vpow.pop %v574
      %v576 = vmul.f32 %v569, 1.442695
      %v577 = vpow.pop %v576
      %v578 = vadd.f32 %v571, 1.0
      %v579 = vadd.f32 %v573, 1.0
      %v580 = vadd.f32 %v575, 1.0
      %v581 = vadd.f32 %v577, 1.0
      %v582 = vrcp.pop %v578
      %v583 = vmul.f32 1.0, %v582
      %v584 = vrcp.pop %v579
      %v585 = vmul.f32 1.0, %v584
      %v586 = vrcp.pop %v580
      %v587 = vmul.f32 1.0, %v586
      %v588 = vrcp.pop %v581
      %v589 = vmul.f32 1.0, %v588
      %v590 = vmul.f32 %v559, %v528
      %v591 = vmul.f32 %v561, %v531
      %v592 = vmul.f32 %v563, %v536
      %v593 = vmul.f32 %v565, %v539
      %v594 = vtanh.pop %v590
      %v595 = vtanh.pop %v591
      %v596 = vtanh.pop %v592
      %v597 = vtanh.pop %v593
      %v598 = vsub.f32 1.0, %v583
      %v599 = vsub.f32 1.0, %v585
      %v600 = vsub.f32 1.0, %v587
      %v601 = vsub.f32 1.0, %v589
      %v602 = vmul.f32 %v598, %v594
      %v603 = vmul.f32 %v599, %v595
      %v604 = vmul.f32 %v600, %v596
      %v605 = vmul.f32 %v601, %v597
      %v606 = vmul.f32 %v583, %v442
      %v607 = vmul.f32 %v585, %v443
      %v608 = vmul.f32 %v587, %v444
      %v609 = vmul.f32 %v589, %v445
      %v610 = vadd.f32 %v602, %v606
      %v611 = vadd.f32 %v603, %v607
      %v612 = vadd.f32 %v604, %v608
      %v613 = vadd.f32 %v605, %v609
      %v614 = vmul.f32 %v610, %v205
      %v615 = vmul.f32 %v611, %v210
      %v616 = vmul.f32 %v612, %v215
      %v617 = vmul.f32 %v613, %v220
      %v618 = vadd.f32 %v614, %v615
      %v619 = vadd.f32 %v618, %v616
      %v620 = vadd.f32 %v619, %v617
      %v621 = vrot.slane %v620, 4
      %v622 = vadd.f32 %v620, %v621
      %v623 = vrot.slane %v622, 2
      %v624 = vadd.f32 %v622, %v623
      %v625 = vrot.slane %v624, 1
      %v626 = vadd.f32 %v624, %v625
      %v627 = vpack.c.bf16 %v611, %v610
      %v628 = vpack.c.bf16 %v613, %v612
      %629 = vmatprep.subr.bf16.mxu0 0
      %630 = vmatpush1.bf16.msra.mxu0 %v627
      %631 = vmatprep.subr.bf16.mxu0 0
      %632 = vmatpush1.bf16.msra.mxu0 %v628
      %633 = vmatprep.subr.bf16.mxu0 0
      %634 = vmatpush1.bf16.msra.mxu0 0
      %635 = vmatprep.subr.bf16.mxu0 0
      %636 = vmatpush1.bf16.msra.mxu0 0
      %637 = vmatprep.subr.bf16.mxu0 0
      %638 = vmatpush1.bf16.msra.mxu0 0
      %639 = vmatprep.subr.bf16.mxu0 0
      %640 = vmatpush1.bf16.msra.mxu0 0
      %641 = vmatprep.subr.bf16.mxu0 0
      %642 = vmatpush1.bf16.msra.mxu0 0
      %643 = vmatprep.subr.bf16.mxu0 0
      %644 = vmatpush1.bf16.msra.mxu0 0
      %645 = vmatprep.subr.bf16.mxu0 0
      %646 = vmatpush1.bf16.msra.mxu0 0
      %647 = vmatprep.subr.bf16.mxu0 0
      %648 = vmatpush1.bf16.msra.mxu0 0
      %649 = vmatprep.subr.bf16.mxu0 0
      %650 = vmatpush1.bf16.msra.mxu0 0
      %651 = vmatprep.subr.bf16.mxu0 0
      %652 = vmatpush1.bf16.msra.mxu0 0
      %653 = vmatprep.subr.bf16.mxu0 0
      %654 = vmatpush1.bf16.msra.mxu0 0
      %655 = vmatprep.subr.bf16.mxu0 0
      %656 = vmatpush1.bf16.msra.mxu0 0
      %657 = vmatprep.subr.bf16.mxu0 0
      %658 = vmatpush1.bf16.msra.mxu0 0
      %659 = vmatprep.subr.bf16.mxu0 0
      %660 = vmatpush1.bf16.msra.mxu0 0
      %661 = vmatprep.mubr.bf16.mxu0 0
      %662 = vmatmul.mubr.bf16.gmra.mrb[0].mxu0 %v276
      %v663 = vpop.f32.mrb[0].mxu0
      %v664 = vadd.f32 0.0, %v663
      %v665 = vpop.f32.mrb[0].mxu0
      %v666 = vpop.f32.mrb[0].mxu0
      %v667 = vadd.f32 0.0, %v666
      %v668 = vpop.f32.mrb[0].mxu0
      %669 = vmatprep.mubr.bf16.mxu0 0
      %670 = vmatmul.mubr.bf16.gmra.mrb[0].mxu0 %v279
      %v671 = vpop.f32.mrb[0].mxu0
      %v672 = vadd.f32 0.0, %v671
      %v673 = vpop.f32.mrb[0].mxu0
      %v674 = vpop.f32.mrb[0].mxu0
      %v675 = vadd.f32 0.0, %v674
      %v676 = vpop.f32.mrb[0].mxu0
      %677 = vmatprep.mubr.bf16.mxu0 0
      %678 = vmatmul.mubr.bf16.gmra.mrb[0].mxu0 %v282
      %v679 = vpop.f32.mrb[0].mxu0
      %v680 = vadd.f32 0.0, %v679
      %v681 = vpop.f32.mrb[0].mxu0
      %v682 = vpop.f32.mrb[0].mxu0
      %v683 = vadd.f32 0.0, %v682
      %v684 = vpop.f32.mrb[0].mxu0
      %685 = vmatprep.mubr.bf16.mxu0 0
      %686 = vmatmul.mubr.bf16.gmra.mrb[0].mxu0 %v285
      %v687 = vpop.f32.mrb[0].mxu0
      %v688 = vadd.f32 0.0, %v687
      %v689 = vpop.f32.mrb[0].mxu0
      %v690 = vpop.f32.mrb[0].mxu0
      %v691 = vadd.f32 0.0, %v690
      %v692 = vpop.f32.mrb[0].mxu0
      %693 = vmatprep.mubr.bf16.mxu0 0
      %694 = vmatmul.mubr.bf16.gmra.mrb[0].mxu0 %v288
      %v695 = vpop.f32.mrb[0].mxu0
      %v696 = vadd.f32 0.0, %v695
      %v697 = vpop.f32.mrb[0].mxu0
      %v698 = vpop.f32.mrb[0].mxu0
      %v699 = vadd.f32 0.0, %v698
      %v700 = vpop.f32.mrb[0].mxu0
      %701 = vmatprep.mubr.bf16.mxu0 0
      %702 = vmatmul.mubr.bf16.gmra.mrb[0].mxu0 %v291
      %v703 = vpop.f32.mrb[0].mxu0
      %v704 = vadd.f32 0.0, %v703
      %v705 = vpop.f32.mrb[0].mxu0
      %v706 = vpop.f32.mrb[0].mxu0
      %v707 = vadd.f32 0.0, %v706
      %v708 = vpop.f32.mrb[0].mxu0
      %709 = vdwg.mxu0
      %v710 = vxor.u32 %v664, 2147483648
      %v711 = vxor.u32 %v667, 2147483648
      %v712 = vxor.u32 %v672, 2147483648
      %v713 = vxor.u32 %v675, 2147483648
      %v714 = vmul.f32 %v710, 1.442695
      %v715 = vpow.pop %v714
      %v716 = vmul.f32 %v711, 1.442695
      %v717 = vpow.pop %v716
      %v718 = vmul.f32 %v712, 1.442695
      %v719 = vpow.pop %v718
      %v720 = vmul.f32 %v713, 1.442695
      %v721 = vpow.pop %v720
      %v722 = vadd.f32 %v715, 1.0
      %v723 = vadd.f32 %v717, 1.0
      %v724 = vadd.f32 %v719, 1.0
      %v725 = vadd.f32 %v721, 1.0
      %v726 = vrcp.pop %v722
      %v727 = vmul.f32 1.0, %v726
      %v728 = vrcp.pop %v723
      %v729 = vmul.f32 1.0, %v728
      %v730 = vrcp.pop %v724
      %v731 = vmul.f32 1.0, %v730
      %v732 = vrcp.pop %v725
      %v733 = vmul.f32 1.0, %v732
      %v734 = vxor.u32 %v680, 2147483648
      %v735 = vxor.u32 %v683, 2147483648
      %v736 = vxor.u32 %v688, 2147483648
      %v737 = vxor.u32 %v691, 2147483648
      %v738 = vmul.f32 %v734, 1.442695
      %v739 = vpow.pop %v738
      %v740 = vmul.f32 %v735, 1.442695
      %v741 = vpow.pop %v740
      %v742 = vmul.f32 %v736, 1.442695
      %v743 = vpow.pop %v742
      %v744 = vmul.f32 %v737, 1.442695
      %v745 = vpow.pop %v744
      %v746 = vadd.f32 %v739, 1.0
      %v747 = vadd.f32 %v741, 1.0
      %v748 = vadd.f32 %v743, 1.0
      %v749 = vadd.f32 %v745, 1.0
      %v750 = vrcp.pop %v746
      %v751 = vmul.f32 1.0, %v750
      %v752 = vrcp.pop %v747
      %v753 = vmul.f32 1.0, %v752
      %v754 = vrcp.pop %v748
      %v755 = vmul.f32 1.0, %v754
      %v756 = vrcp.pop %v749
      %v757 = vmul.f32 1.0, %v756
      %v758 = vmul.f32 %v727, %v696
      %v759 = vmul.f32 %v729, %v699
      %v760 = vmul.f32 %v731, %v704
      %v761 = vmul.f32 %v733, %v707
      %v762 = vtanh.pop %v758
      %v763 = vtanh.pop %v759
      %v764 = vtanh.pop %v760
      %v765 = vtanh.pop %v761
      %v766 = vsub.f32 1.0, %v751
      %v767 = vsub.f32 1.0, %v753
      %v768 = vsub.f32 1.0, %v755
      %v769 = vsub.f32 1.0, %v757
      %v770 = vmul.f32 %v766, %v762
      %v771 = vmul.f32 %v767, %v763
      %v772 = vmul.f32 %v768, %v764
      %v773 = vmul.f32 %v769, %v765
      %v774 = vmul.f32 %v751, %v610
      %v775 = vmul.f32 %v753, %v611
      %v776 = vmul.f32 %v755, %v612
      %v777 = vmul.f32 %v757, %v613
      %v778 = vadd.f32 %v770, %v774
      %v779 = vadd.f32 %v771, %v775
      %v780 = vadd.f32 %v772, %v776
      %v781 = vadd.f32 %v773, %v777
      %v782 = vmul.f32 %v778, %v205
      %v783 = vmul.f32 %v779, %v210
      %v784 = vmul.f32 %v780, %v215
      %v785 = vmul.f32 %v781, %v220
      %v786 = vadd.f32 %v782, %v783
      %v787 = vadd.f32 %v786, %v784
      %v788 = vadd.f32 %v787, %v785
      %v789 = vrot.slane %v788, 4
      %v790 = vadd.f32 %v788, %v789
      %v791 = vrot.slane %v790, 2
      %v792 = vadd.f32 %v790, %v791
      %v793 = vrot.slane %v792, 1
      %v794 = vadd.f32 %v792, %v793
      %v795 = vpack.c.bf16 %v779, %v778
      %v796 = vpack.c.bf16 %v781, %v780
      %797 = vmatprep.subr.bf16.mxu0 0
      %798 = vmatpush1.bf16.msra.mxu0 %v795
      %799 = vmatprep.subr.bf16.mxu0 0
      %800 = vmatpush1.bf16.msra.mxu0 %v796
      %801 = vmatprep.subr.bf16.mxu0 0
      %802 = vmatpush1.bf16.msra.mxu0 0
      %803 = vmatprep.subr.bf16.mxu0 0
      %804 = vmatpush1.bf16.msra.mxu0 0
      %805 = vmatprep.subr.bf16.mxu0 0
      %806 = vmatpush1.bf16.msra.mxu0 0
      %807 = vmatprep.subr.bf16.mxu0 0
      %808 = vmatpush1.bf16.msra.mxu0 0
      %809 = vmatprep.subr.bf16.mxu0 0
      %810 = vmatpush1.bf16.msra.mxu0 0
      %811 = vmatprep.subr.bf16.mxu0 0
      %812 = vmatpush1.bf16.msra.mxu0 0
      %813 = vmatprep.subr.bf16.mxu0 0
      %814 = vmatpush1.bf16.msra.mxu0 0
      %815 = vmatprep.subr.bf16.mxu0 0
      %816 = vmatpush1.bf16.msra.mxu0 0
      %817 = vmatprep.subr.bf16.mxu0 0
      %818 = vmatpush1.bf16.msra.mxu0 0
      %819 = vmatprep.subr.bf16.mxu0 0
      %820 = vmatpush1.bf16.msra.mxu0 0
      %821 = vmatprep.subr.bf16.mxu0 0
      %822 = vmatpush1.bf16.msra.mxu0 0
      %823 = vmatprep.subr.bf16.mxu0 0
      %824 = vmatpush1.bf16.msra.mxu0 0
      %825 = vmatprep.subr.bf16.mxu0 0
      %826 = vmatpush1.bf16.msra.mxu0 0
      %827 = vmatprep.subr.bf16.mxu0 0
      %828 = vmatpush1.bf16.msra.mxu0 0
      %829 = vmatprep.mubr.bf16.mxu0 0
      %830 = vmatmul.mubr.bf16.gmra.mrb[0].mxu0 %v276
      %v831 = vpop.f32.mrb[0].mxu0
      %v832 = vadd.f32 0.0, %v831
      %v833 = vpop.f32.mrb[0].mxu0
      %v834 = vpop.f32.mrb[0].mxu0
      %v835 = vadd.f32 0.0, %v834
      %v836 = vpop.f32.mrb[0].mxu0
      %837 = vmatprep.mubr.bf16.mxu0 0
      %838 = vmatmul.mubr.bf16.gmra.mrb[0].mxu0 %v279
      %v839 = vpop.f32.mrb[0].mxu0
      %v840 = vadd.f32 0.0, %v839
      %v841 = vpop.f32.mrb[0].mxu0
      %v842 = vpop.f32.mrb[0].mxu0
      %v843 = vadd.f32 0.0, %v842
      %v844 = vpop.f32.mrb[0].mxu0
      %845 = vmatprep.mubr.bf16.mxu0 0
      %846 = vmatmul.mubr.bf16.gmra.mrb[0].mxu0 %v282
      %v847 = vpop.f32.mrb[0].mxu0
      %v848 = vadd.f32 0.0, %v847
      %v849 = vpop.f32.mrb[0].mxu0
      %v850 = vpop.f32.mrb[0].mxu0
      %v851 = vadd.f32 0.0, %v850
      %v852 = vpop.f32.mrb[0].mxu0
      %853 = vmatprep.mubr.bf16.mxu0 0
      %854 = vmatmul.mubr.bf16.gmra.mrb[0].mxu0 %v285
      %v855 = vpop.f32.mrb[0].mxu0
      %v856 = vadd.f32 0.0, %v855
      %v857 = vpop.f32.mrb[0].mxu0
      %v858 = vpop.f32.mrb[0].mxu0
      %v859 = vadd.f32 0.0, %v858
      %v860 = vpop.f32.mrb[0].mxu0
      %861 = vmatprep.mubr.bf16.mxu0 0
      %862 = vmatmul.mubr.bf16.gmra.mrb[0].mxu0 %v288
      %v863 = vpop.f32.mrb[0].mxu0
      %v864 = vadd.f32 0.0, %v863
      %v865 = vpop.f32.mrb[0].mxu0
      %v866 = vpop.f32.mrb[0].mxu0
      %v867 = vadd.f32 0.0, %v866
      %v868 = vpop.f32.mrb[0].mxu0
      %869 = vmatprep.mubr.bf16.mxu0 0
      %870 = vmatmul.mubr.bf16.gmra.mrb[0].mxu0 %v291
      %v871 = vpop.f32.mrb[0].mxu0
      %v872 = vadd.f32 0.0, %v871
      %v873 = vpop.f32.mrb[0].mxu0
      %v874 = vpop.f32.mrb[0].mxu0
      %v875 = vadd.f32 0.0, %v874
      %v876 = vpop.f32.mrb[0].mxu0
      %877 = vdwg.mxu0
      %v878 = vxor.u32 %v832, 2147483648
      %v879 = vxor.u32 %v835, 2147483648
      %v880 = vxor.u32 %v840, 2147483648
      %v881 = vxor.u32 %v843, 2147483648
      %v882 = vmul.f32 %v878, 1.442695
      %v883 = vpow.pop %v882
      %v884 = vmul.f32 %v879, 1.442695
      %v885 = vpow.pop %v884
      %v886 = vmul.f32 %v880, 1.442695
      %v887 = vpow.pop %v886
      %v888 = vmul.f32 %v881, 1.442695
      %v889 = vpow.pop %v888
      %v890 = vadd.f32 %v883, 1.0
      %v891 = vadd.f32 %v885, 1.0
      %v892 = vadd.f32 %v887, 1.0
      %v893 = vadd.f32 %v889, 1.0
      %v894 = vrcp.pop %v890
      %v895 = vmul.f32 1.0, %v894
      %v896 = vrcp.pop %v891
      %v897 = vmul.f32 1.0, %v896
      %v898 = vrcp.pop %v892
      %v899 = vmul.f32 1.0, %v898
      %v900 = vrcp.pop %v893
      %v901 = vmul.f32 1.0, %v900
      %v902 = vxor.u32 %v848, 2147483648
      %v903 = vxor.u32 %v851, 2147483648
      %v904 = vxor.u32 %v856, 2147483648
      %v905 = vxor.u32 %v859, 2147483648
      %v906 = vmul.f32 %v902, 1.442695
      %v907 = vpow.pop %v906
      %v908 = vmul.f32 %v903, 1.442695
      %v909 = vpow.pop %v908
      %v910 = vmul.f32 %v904, 1.442695
      %v911 = vpow.pop %v910
      %v912 = vmul.f32 %v905, 1.442695
      %v913 = vpow.pop %v912
      %v914 = vadd.f32 %v907, 1.0
      %v915 = vadd.f32 %v909, 1.0
      %v916 = vadd.f32 %v911, 1.0
      %v917 = vadd.f32 %v913, 1.0
      %v918 = vrcp.pop %v914
      %v919 = vmul.f32 1.0, %v918
      %v920 = vrcp.pop %v915
      %v921 = vmul.f32 1.0, %v920
      %v922 = vrcp.pop %v916
      %v923 = vmul.f32 1.0, %v922
      %v924 = vrcp.pop %v917
      %v925 = vmul.f32 1.0, %v924
      %v926 = vmul.f32 %v895, %v864
      %v927 = vmul.f32 %v897, %v867
      %v928 = vmul.f32 %v899, %v872
      %v929 = vmul.f32 %v901, %v875
      %v930 = vtanh.pop %v926
      %v931 = vtanh.pop %v927
      %v932 = vtanh.pop %v928
      %v933 = vtanh.pop %v929
      %v934 = vsub.f32 1.0, %v919
      %v935 = vsub.f32 1.0, %v921
      %v936 = vsub.f32 1.0, %v923
      %v937 = vsub.f32 1.0, %v925
      %v938 = vmul.f32 %v934, %v930
      %v939 = vmul.f32 %v935, %v931
      %v940 = vmul.f32 %v936, %v932
      %v941 = vmul.f32 %v937, %v933
      %v942 = vmul.f32 %v919, %v778
      %v943 = vmul.f32 %v921, %v779
      %v944 = vmul.f32 %v923, %v780
      %v945 = vmul.f32 %v925, %v781
      %v946 = vadd.f32 %v938, %v942
      %v947 = vadd.f32 %v939, %v943
      %v948 = vadd.f32 %v940, %v944
      %v949 = vadd.f32 %v941, %v945
      %v950 = vmul.f32 %v946, %v205
      %v951 = vmul.f32 %v947, %v210
      %v952 = vmul.f32 %v948, %v215
      %v953 = vmul.f32 %v949, %v220
      %v954 = vadd.f32 %v950, %v951
      %v955 = vadd.f32 %v954, %v952
      %v956 = vadd.f32 %v955, %v953
      %v957 = vrot.slane %v956, 4
      %v958 = vadd.f32 %v956, %v957
      %v959 = vrot.slane %v958, 2
      %v960 = vadd.f32 %v958, %v959
      %v961 = vrot.slane %v960, 1
      %v962 = vadd.f32 %v960, %v961
      %v963 = vpack.c.bf16 %v947, %v946
      %v964 = vpack.c.bf16 %v949, %v948
      %965 = vmatprep.subr.bf16.mxu0 0
      %966 = vmatpush1.bf16.msra.mxu0 %v963
      %967 = vmatprep.subr.bf16.mxu0 0
      %968 = vmatpush1.bf16.msra.mxu0 %v964
      %969 = vmatprep.subr.bf16.mxu0 0
      %970 = vmatpush1.bf16.msra.mxu0 0
      %971 = vmatprep.subr.bf16.mxu0 0
      %972 = vmatpush1.bf16.msra.mxu0 0
      %973 = vmatprep.subr.bf16.mxu0 0
      %974 = vmatpush1.bf16.msra.mxu0 0
      %975 = vmatprep.subr.bf16.mxu0 0
      %976 = vmatpush1.bf16.msra.mxu0 0
      %977 = vmatprep.subr.bf16.mxu0 0
      %978 = vmatpush1.bf16.msra.mxu0 0
      %979 = vmatprep.subr.bf16.mxu0 0
      %980 = vmatpush1.bf16.msra.mxu0 0
      %981 = vmatprep.subr.bf16.mxu0 0
      %982 = vmatpush1.bf16.msra.mxu0 0
      %983 = vmatprep.subr.bf16.mxu0 0
      %984 = vmatpush1.bf16.msra.mxu0 0
      %985 = vmatprep.subr.bf16.mxu0 0
      %986 = vmatpush1.bf16.msra.mxu0 0
      %987 = vmatprep.subr.bf16.mxu0 0
      %988 = vmatpush1.bf16.msra.mxu0 0
      %989 = vmatprep.subr.bf16.mxu0 0
      %990 = vmatpush1.bf16.msra.mxu0 0
      %991 = vmatprep.subr.bf16.mxu0 0
      %992 = vmatpush1.bf16.msra.mxu0 0
      %993 = vmatprep.subr.bf16.mxu0 0
      %994 = vmatpush1.bf16.msra.mxu0 0
      %995 = vmatprep.subr.bf16.mxu0 0
      %996 = vmatpush1.bf16.msra.mxu0 0
      %997 = vmatprep.mubr.bf16.mxu0 0
      %998 = vmatmul.mubr.bf16.gmra.mrb[0].mxu0 %v276
      %v999 = vpop.f32.mrb[0].mxu0
      %v1000 = vadd.f32 0.0, %v999
      %v1001 = vpop.f32.mrb[0].mxu0
      %v1002 = vpop.f32.mrb[0].mxu0
      %v1003 = vadd.f32 0.0, %v1002
      %v1004 = vpop.f32.mrb[0].mxu0
      %1005 = vmatprep.mubr.bf16.mxu0 0
      %1006 = vmatmul.mubr.bf16.gmra.mrb[0].mxu0 %v279
      %v1007 = vpop.f32.mrb[0].mxu0
      %v1008 = vadd.f32 0.0, %v1007
      %v1009 = vpop.f32.mrb[0].mxu0
      %v1010 = vpop.f32.mrb[0].mxu0
      %v1011 = vadd.f32 0.0, %v1010
      %v1012 = vpop.f32.mrb[0].mxu0
      %1013 = vmatprep.mubr.bf16.mxu0 0
      %1014 = vmatmul.mubr.bf16.gmra.mrb[0].mxu0 %v282
      %v1015 = vpop.f32.mrb[0].mxu0
      %v1016 = vadd.f32 0.0, %v1015
      %v1017 = vpop.f32.mrb[0].mxu0
      %v1018 = vpop.f32.mrb[0].mxu0
      %v1019 = vadd.f32 0.0, %v1018
      %v1020 = vpop.f32.mrb[0].mxu0
      %1021 = vmatprep.mubr.bf16.mxu0 0
      %1022 = vmatmul.mubr.bf16.gmra.mrb[0].mxu0 %v285
      %v1023 = vpop.f32.mrb[0].mxu0
      %v1024 = vadd.f32 0.0, %v1023
      %v1025 = vpop.f32.mrb[0].mxu0
      %v1026 = vpop.f32.mrb[0].mxu0
      %v1027 = vadd.f32 0.0, %v1026
      %v1028 = vpop.f32.mrb[0].mxu0
      %1029 = vmatprep.mubr.bf16.mxu0 0
      %1030 = vmatmul.mubr.bf16.gmra.mrb[0].mxu0 %v288
      %v1031 = vpop.f32.mrb[0].mxu0
      %v1032 = vadd.f32 0.0, %v1031
      %v1033 = vpop.f32.mrb[0].mxu0
      %v1034 = vpop.f32.mrb[0].mxu0
      %v1035 = vadd.f32 0.0, %v1034
      %v1036 = vpop.f32.mrb[0].mxu0
      %1037 = vmatprep.mubr.bf16.mxu0 0
      %1038 = vmatmul.mubr.bf16.gmra.mrb[0].mxu0 %v291
      %v1039 = vpop.f32.mrb[0].mxu0
      %v1040 = vadd.f32 0.0, %v1039
      %v1041 = vpop.f32.mrb[0].mxu0
      %v1042 = vpop.f32.mrb[0].mxu0
      %v1043 = vadd.f32 0.0, %v1042
      %v1044 = vpop.f32.mrb[0].mxu0
      %1045 = vdwg.mxu0
      %v1046 = vxor.u32 %v1000, 2147483648
      %v1047 = vxor.u32 %v1003, 2147483648
      %v1048 = vxor.u32 %v1008, 2147483648
      %v1049 = vxor.u32 %v1011, 2147483648
      %v1050 = vmul.f32 %v1046, 1.442695
      %v1051 = vpow.pop %v1050
      %v1052 = vmul.f32 %v1047, 1.442695
      %v1053 = vpow.pop %v1052
      %v1054 = vmul.f32 %v1048, 1.442695
      %v1055 = vpow.pop %v1054
      %v1056 = vmul.f32 %v1049, 1.442695
      %v1057 = vpow.pop %v1056
      %v1058 = vadd.f32 %v1051, 1.0
      %v1059 = vadd.f32 %v1053, 1.0
      %v1060 = vadd.f32 %v1055, 1.0
      %v1061 = vadd.f32 %v1057, 1.0
      %v1062 = vrcp.pop %v1058
      %v1063 = vmul.f32 1.0, %v1062
      %v1064 = vrcp.pop %v1059
      %v1065 = vmul.f32 1.0, %v1064
      %v1066 = vrcp.pop %v1060
      %v1067 = vmul.f32 1.0, %v1066
      %v1068 = vrcp.pop %v1061
      %v1069 = vmul.f32 1.0, %v1068
      %v1070 = vxor.u32 %v1016, 2147483648
      %v1071 = vxor.u32 %v1019, 2147483648
      %v1072 = vxor.u32 %v1024, 2147483648
      %v1073 = vxor.u32 %v1027, 2147483648
      %v1074 = vmul.f32 %v1070, 1.442695
      %v1075 = vpow.pop %v1074
      %v1076 = vmul.f32 %v1071, 1.442695
      %v1077 = vpow.pop %v1076
      %v1078 = vmul.f32 %v1072, 1.442695
      %v1079 = vpow.pop %v1078
      %v1080 = vmul.f32 %v1073, 1.442695
      %v1081 = vpow.pop %v1080
      %v1082 = vadd.f32 %v1075, 1.0
      %v1083 = vadd.f32 %v1077, 1.0
      %v1084 = vadd.f32 %v1079, 1.0
      %v1085 = vadd.f32 %v1081, 1.0
      %v1086 = vrcp.pop %v1082
      %v1087 = vmul.f32 1.0, %v1086
      %v1088 = vrcp.pop %v1083
      %v1089 = vmul.f32 1.0, %v1088
      %v1090 = vrcp.pop %v1084
      %v1091 = vmul.f32 1.0, %v1090
      %v1092 = vrcp.pop %v1085
      %v1093 = vmul.f32 1.0, %v1092
      %v1094 = vmul.f32 %v1063, %v1032
      %v1095 = vmul.f32 %v1065, %v1035
      %v1096 = vmul.f32 %v1067, %v1040
      %v1097 = vmul.f32 %v1069, %v1043
      %v1098 = vtanh.pop %v1094
      %v1099 = vtanh.pop %v1095
      %v1100 = vtanh.pop %v1096
      %v1101 = vtanh.pop %v1097
      %v1102 = vsub.f32 1.0, %v1087
      %v1103 = vsub.f32 1.0, %v1089
      %v1104 = vsub.f32 1.0, %v1091
      %v1105 = vsub.f32 1.0, %v1093
      %v1106 = vmul.f32 %v1102, %v1098
      %v1107 = vmul.f32 %v1103, %v1099
      %v1108 = vmul.f32 %v1104, %v1100
      %v1109 = vmul.f32 %v1105, %v1101
      %v1110 = vmul.f32 %v1087, %v946
      %v1111 = vmul.f32 %v1089, %v947
      %v1112 = vmul.f32 %v1091, %v948
      %v1113 = vmul.f32 %v1093, %v949
      %v1114 = vadd.f32 %v1106, %v1110
      %v1115 = vadd.f32 %v1107, %v1111
      %v1116 = vadd.f32 %v1108, %v1112
      %v1117 = vadd.f32 %v1109, %v1113
      %v1118 = vmul.f32 %v1114, %v205
      %v1119 = vmul.f32 %v1115, %v210
      %v1120 = vmul.f32 %v1116, %v215
      %v1121 = vmul.f32 %v1117, %v220
      %v1122 = vadd.f32 %v1118, %v1119
      %v1123 = vadd.f32 %v1122, %v1120
      %v1124 = vadd.f32 %v1123, %v1121
      %v1125 = vrot.slane %v1124, 4
      %v1126 = vadd.f32 %v1124, %v1125
      %v1127 = vrot.slane %v1126, 2
      %v1128 = vadd.f32 %v1126, %v1127
      %v1129 = vrot.slane %v1128, 1
      %v1130 = vadd.f32 %v1128, %v1129
      %v1131 = vpack.c.bf16 %v1115, %v1114
      %v1132 = vpack.c.bf16 %v1117, %v1116
      %1133 = vmatprep.subr.bf16.mxu0 0
      %1134 = vmatpush1.bf16.msra.mxu0 %v1131
      %1135 = vmatprep.subr.bf16.mxu0 0
      %1136 = vmatpush1.bf16.msra.mxu0 %v1132
      %1137 = vmatprep.subr.bf16.mxu0 0
      %1138 = vmatpush1.bf16.msra.mxu0 0
      %1139 = vmatprep.subr.bf16.mxu0 0
      %1140 = vmatpush1.bf16.msra.mxu0 0
      %1141 = vmatprep.subr.bf16.mxu0 0
      %1142 = vmatpush1.bf16.msra.mxu0 0
      %1143 = vmatprep.subr.bf16.mxu0 0
      %1144 = vmatpush1.bf16.msra.mxu0 0
      %1145 = vmatprep.subr.bf16.mxu0 0
      %1146 = vmatpush1.bf16.msra.mxu0 0
      %1147 = vmatprep.subr.bf16.mxu0 0
      %1148 = vmatpush1.bf16.msra.mxu0 0
      %1149 = vmatprep.subr.bf16.mxu0 0
      %1150 = vmatpush1.bf16.msra.mxu0 0
      %1151 = vmatprep.subr.bf16.mxu0 0
      %1152 = vmatpush1.bf16.msra.mxu0 0
      %1153 = vmatprep.subr.bf16.mxu0 0
      %1154 = vmatpush1.bf16.msra.mxu0 0
      %1155 = vmatprep.subr.bf16.mxu0 0
      %1156 = vmatpush1.bf16.msra.mxu0 0
      %1157 = vmatprep.subr.bf16.mxu0 0
      %1158 = vmatpush1.bf16.msra.mxu0 0
      %1159 = vmatprep.subr.bf16.mxu0 0
      %1160 = vmatpush1.bf16.msra.mxu0 0
      %1161 = vmatprep.subr.bf16.mxu0 0
      %1162 = vmatpush1.bf16.msra.mxu0 0
      %1163 = vmatprep.subr.bf16.mxu0 0
      %1164 = vmatpush1.bf16.msra.mxu0 0
      %1165 = vmatprep.mubr.bf16.mxu0 0
      %1166 = vmatmul.mubr.bf16.gmra.mrb[0].mxu0 %v276
      %v1167 = vpop.f32.mrb[0].mxu0
      %v1168 = vadd.f32 0.0, %v1167
      %v1169 = vpop.f32.mrb[0].mxu0
      %v1170 = vpop.f32.mrb[0].mxu0
      %v1171 = vadd.f32 0.0, %v1170
      %v1172 = vpop.f32.mrb[0].mxu0
      %1173 = vmatprep.mubr.bf16.mxu0 0
      %1174 = vmatmul.mubr.bf16.gmra.mrb[0].mxu0 %v279
      %v1175 = vpop.f32.mrb[0].mxu0
      %v1176 = vadd.f32 0.0, %v1175
      %v1177 = vpop.f32.mrb[0].mxu0
      %v1178 = vpop.f32.mrb[0].mxu0
      %v1179 = vadd.f32 0.0, %v1178
      %v1180 = vpop.f32.mrb[0].mxu0
      %1181 = vmatprep.mubr.bf16.mxu0 0
      %1182 = vmatmul.mubr.bf16.gmra.mrb[0].mxu0 %v282
      %v1183 = vpop.f32.mrb[0].mxu0
      %v1184 = vadd.f32 0.0, %v1183
      %v1185 = vpop.f32.mrb[0].mxu0
      %v1186 = vpop.f32.mrb[0].mxu0
      %v1187 = vadd.f32 0.0, %v1186
      %v1188 = vpop.f32.mrb[0].mxu0
      %1189 = vmatprep.mubr.bf16.mxu0 0
      %1190 = vmatmul.mubr.bf16.gmra.mrb[0].mxu0 %v285
      %v1191 = vpop.f32.mrb[0].mxu0
      %v1192 = vadd.f32 0.0, %v1191
      %v1193 = vpop.f32.mrb[0].mxu0
      %v1194 = vpop.f32.mrb[0].mxu0
      %v1195 = vadd.f32 0.0, %v1194
      %v1196 = vpop.f32.mrb[0].mxu0
      %1197 = vmatprep.mubr.bf16.mxu0 0
      %1198 = vmatmul.mubr.bf16.gmra.mrb[0].mxu0 %v288
      %v1199 = vpop.f32.mrb[0].mxu0
      %v1200 = vadd.f32 0.0, %v1199
      %v1201 = vpop.f32.mrb[0].mxu0
      %v1202 = vpop.f32.mrb[0].mxu0
      %v1203 = vadd.f32 0.0, %v1202
      %v1204 = vpop.f32.mrb[0].mxu0
      %1205 = vmatprep.mubr.bf16.mxu0 0
      %1206 = vmatmul.mubr.bf16.gmra.mrb[0].mxu0 %v291
      %v1207 = vpop.f32.mrb[0].mxu0
      %v1208 = vadd.f32 0.0, %v1207
      %v1209 = vpop.f32.mrb[0].mxu0
      %v1210 = vpop.f32.mrb[0].mxu0
      %v1211 = vadd.f32 0.0, %v1210
      %v1212 = vpop.f32.mrb[0].mxu0
      %1213 = vdwg.mxu0
      %v1214 = vxor.u32 %v1168, 2147483648
      %v1215 = vxor.u32 %v1171, 2147483648
      %v1216 = vxor.u32 %v1176, 2147483648
      %v1217 = vxor.u32 %v1179, 2147483648
      %v1218 = vmul.f32 %v1214, 1.442695
      %v1219 = vpow.pop %v1218
      %v1220 = vmul.f32 %v1215, 1.442695
      %v1221 = vpow.pop %v1220
      %v1222 = vmul.f32 %v1216, 1.442695
      %v1223 = vpow.pop %v1222
      %v1224 = vmul.f32 %v1217, 1.442695
      %v1225 = vpow.pop %v1224
      %v1226 = vadd.f32 %v1219, 1.0
      %v1227 = vadd.f32 %v1221, 1.0
      %v1228 = vadd.f32 %v1223, 1.0
      %v1229 = vadd.f32 %v1225, 1.0
      %v1230 = vrcp.pop %v1226
      %v1231 = vmul.f32 1.0, %v1230
      %v1232 = vrcp.pop %v1227
      %v1233 = vmul.f32 1.0, %v1232
      %v1234 = vrcp.pop %v1228
      %v1235 = vmul.f32 1.0, %v1234
      %v1236 = vrcp.pop %v1229
      %v1237 = vmul.f32 1.0, %v1236
      %v1238 = vxor.u32 %v1184, 2147483648
      %v1239 = vxor.u32 %v1187, 2147483648
      %v1240 = vxor.u32 %v1192, 2147483648
      %v1241 = vxor.u32 %v1195, 2147483648
      %v1242 = vmul.f32 %v1238, 1.442695
      %v1243 = vpow.pop %v1242
      %v1244 = vmul.f32 %v1239, 1.442695
      %v1245 = vpow.pop %v1244
      %v1246 = vmul.f32 %v1240, 1.442695
      %v1247 = vpow.pop %v1246
      %v1248 = vmul.f32 %v1241, 1.442695
      %v1249 = vpow.pop %v1248
      %v1250 = vadd.f32 %v1243, 1.0
      %v1251 = vadd.f32 %v1245, 1.0
      %v1252 = vadd.f32 %v1247, 1.0
      %v1253 = vadd.f32 %v1249, 1.0
      %v1254 = vrcp.pop %v1250
      %v1255 = vmul.f32 1.0, %v1254
      %v1256 = vrcp.pop %v1251
      %v1257 = vmul.f32 1.0, %v1256
      %v1258 = vrcp.pop %v1252
      %v1259 = vmul.f32 1.0, %v1258
      %v1260 = vrcp.pop %v1253
      %v1261 = vmul.f32 1.0, %v1260
      %v1262 = vmul.f32 %v1231, %v1200
      %v1263 = vmul.f32 %v1233, %v1203
      %v1264 = vmul.f32 %v1235, %v1208
      %v1265 = vmul.f32 %v1237, %v1211
      %v1266 = vtanh.pop %v1262
      %v1267 = vtanh.pop %v1263
      %v1268 = vtanh.pop %v1264
      %v1269 = vtanh.pop %v1265
      %v1270 = vsub.f32 1.0, %v1255
      %v1271 = vsub.f32 1.0, %v1257
      %v1272 = vsub.f32 1.0, %v1259
      %v1273 = vsub.f32 1.0, %v1261
      %v1274 = vmul.f32 %v1270, %v1266
      %v1275 = vmul.f32 %v1271, %v1267
      %v1276 = vmul.f32 %v1272, %v1268
      %v1277 = vmul.f32 %v1273, %v1269
      %v1278 = vmul.f32 %v1255, %v1114
      %v1279 = vmul.f32 %v1257, %v1115
      %v1280 = vmul.f32 %v1259, %v1116
      %v1281 = vmul.f32 %v1261, %v1117
      %v1282 = vadd.f32 %v1274, %v1278
      %v1283 = vadd.f32 %v1275, %v1279
      %v1284 = vadd.f32 %v1276, %v1280
      %v1285 = vadd.f32 %v1277, %v1281
      %v1286 = vmul.f32 %v1282, %v205
      %v1287 = vmul.f32 %v1283, %v210
      %v1288 = vmul.f32 %v1284, %v215
      %v1289 = vmul.f32 %v1285, %v220
      %v1290 = vadd.f32 %v1286, %v1287
      %v1291 = vadd.f32 %v1290, %v1288
      %v1292 = vadd.f32 %v1291, %v1289
      %v1293 = vrot.slane %v1292, 4
      %v1294 = vadd.f32 %v1292, %v1293
      %v1295 = vrot.slane %v1294, 2
      %v1296 = vadd.f32 %v1294, %v1295
      %v1297 = vrot.slane %v1296, 1
      %v1298 = vadd.f32 %v1296, %v1297
      %v1299 = vpack.c.bf16 %v1283, %v1282
      %v1300 = vpack.c.bf16 %v1285, %v1284
      %1301 = vmatprep.subr.bf16.mxu0 0
      %1302 = vmatpush1.bf16.msra.mxu0 %v1299
      %1303 = vmatprep.subr.bf16.mxu0 0
      %1304 = vmatpush1.bf16.msra.mxu0 %v1300
      %1305 = vmatprep.subr.bf16.mxu0 0
      %1306 = vmatpush1.bf16.msra.mxu0 0
      %1307 = vmatprep.subr.bf16.mxu0 0
      %1308 = vmatpush1.bf16.msra.mxu0 0
      %1309 = vmatprep.subr.bf16.mxu0 0
      %1310 = vmatpush1.bf16.msra.mxu0 0
      %1311 = vmatprep.subr.bf16.mxu0 0
      %1312 = vmatpush1.bf16.msra.mxu0 0
      %1313 = vmatprep.subr.bf16.mxu0 0
      %1314 = vmatpush1.bf16.msra.mxu0 0
      %1315 = vmatprep.subr.bf16.mxu0 0
      %1316 = vmatpush1.bf16.msra.mxu0 0
      %1317 = vmatprep.subr.bf16.mxu0 0
      %1318 = vmatpush1.bf16.msra.mxu0 0
      %1319 = vmatprep.subr.bf16.mxu0 0
      %1320 = vmatpush1.bf16.msra.mxu0 0
      %1321 = vmatprep.subr.bf16.mxu0 0
      %1322 = vmatpush1.bf16.msra.mxu0 0
      %1323 = vmatprep.subr.bf16.mxu0 0
      %1324 = vmatpush1.bf16.msra.mxu0 0
      %1325 = vmatprep.subr.bf16.mxu0 0
      %1326 = vmatpush1.bf16.msra.mxu0 0
      %1327 = vmatprep.subr.bf16.mxu0 0
      %1328 = vmatpush1.bf16.msra.mxu0 0
      %1329 = vmatprep.subr.bf16.mxu0 0
      %1330 = vmatpush1.bf16.msra.mxu0 0
      %1331 = vmatprep.subr.bf16.mxu0 0
      %1332 = vmatpush1.bf16.msra.mxu0 0
      %1333 = vmatprep.mubr.bf16.mxu0 0
      %1334 = vmatmul.mubr.bf16.gmra.mrb[0].mxu0 %v276
      %v1335 = vpop.f32.mrb[0].mxu0
      %v1336 = vadd.f32 0.0, %v1335
      %v1337 = vpop.f32.mrb[0].mxu0
      %v1338 = vpop.f32.mrb[0].mxu0
      %v1339 = vadd.f32 0.0, %v1338
      %v1340 = vpop.f32.mrb[0].mxu0
      %1341 = vmatprep.mubr.bf16.mxu0 0
      %1342 = vmatmul.mubr.bf16.gmra.mrb[0].mxu0 %v279
      %v1343 = vpop.f32.mrb[0].mxu0
      %v1344 = vadd.f32 0.0, %v1343
      %v1345 = vpop.f32.mrb[0].mxu0
      %v1346 = vpop.f32.mrb[0].mxu0
      %v1347 = vadd.f32 0.0, %v1346
      %v1348 = vpop.f32.mrb[0].mxu0
      %1349 = vmatprep.mubr.bf16.mxu0 0
      %1350 = vmatmul.mubr.bf16.gmra.mrb[0].mxu0 %v282
      %v1351 = vpop.f32.mrb[0].mxu0
      %v1352 = vadd.f32 0.0, %v1351
      %v1353 = vpop.f32.mrb[0].mxu0
      %v1354 = vpop.f32.mrb[0].mxu0
      %v1355 = vadd.f32 0.0, %v1354
      %v1356 = vpop.f32.mrb[0].mxu0
      %1357 = vmatprep.mubr.bf16.mxu0 0
      %1358 = vmatmul.mubr.bf16.gmra.mrb[0].mxu0 %v285
      %v1359 = vpop.f32.mrb[0].mxu0
      %v1360 = vadd.f32 0.0, %v1359
      %v1361 = vpop.f32.mrb[0].mxu0
      %v1362 = vpop.f32.mrb[0].mxu0
      %v1363 = vadd.f32 0.0, %v1362
      %v1364 = vpop.f32.mrb[0].mxu0
      %1365 = vmatprep.mubr.bf16.mxu0 0
      %1366 = vmatmul.mubr.bf16.gmra.mrb[0].mxu0 %v288
      %v1367 = vpop.f32.mrb[0].mxu0
      %v1368 = vadd.f32 0.0, %v1367
      %v1369 = vpop.f32.mrb[0].mxu0
      %v1370 = vpop.f32.mrb[0].mxu0
      %v1371 = vadd.f32 0.0, %v1370
      %v1372 = vpop.f32.mrb[0].mxu0
      %1373 = vmatprep.mubr.bf16.mxu0 0
      %1374 = vmatmul.mubr.bf16.gmra.mrb[0].mxu0 %v291
      %v1375 = vpop.f32.mrb[0].mxu0
      %v1376 = vadd.f32 0.0, %v1375
      %v1377 = vpop.f32.mrb[0].mxu0
      %v1378 = vpop.f32.mrb[0].mxu0
      %v1379 = vadd.f32 0.0, %v1378
      %v1380 = vpop.f32.mrb[0].mxu0
      %1381 = vdwg.mxu0
      %v1382 = vxor.u32 %v1336, 2147483648
      %v1383 = vxor.u32 %v1339, 2147483648
      %v1384 = vxor.u32 %v1344, 2147483648
      %v1385 = vxor.u32 %v1347, 2147483648
      %v1386 = vmul.f32 %v1382, 1.442695
      %v1387 = vpow.pop %v1386
      %v1388 = vmul.f32 %v1383, 1.442695
      %v1389 = vpow.pop %v1388
      %v1390 = vmul.f32 %v1384, 1.442695
      %v1391 = vpow.pop %v1390
      %v1392 = vmul.f32 %v1385, 1.442695
      %v1393 = vpow.pop %v1392
      %v1394 = vadd.f32 %v1387, 1.0
      %v1395 = vadd.f32 %v1389, 1.0
      %v1396 = vadd.f32 %v1391, 1.0
      %v1397 = vadd.f32 %v1393, 1.0
      %v1398 = vrcp.pop %v1394
      %v1399 = vmul.f32 1.0, %v1398
      %v1400 = vrcp.pop %v1395
      %v1401 = vmul.f32 1.0, %v1400
      %v1402 = vrcp.pop %v1396
      %v1403 = vmul.f32 1.0, %v1402
      %v1404 = vrcp.pop %v1397
      %v1405 = vmul.f32 1.0, %v1404
      %v1406 = vxor.u32 %v1352, 2147483648
      %v1407 = vxor.u32 %v1355, 2147483648
      %v1408 = vxor.u32 %v1360, 2147483648
      %v1409 = vxor.u32 %v1363, 2147483648
      %v1410 = vmul.f32 %v1406, 1.442695
      %v1411 = vpow.pop %v1410
      %v1412 = vmul.f32 %v1407, 1.442695
      %v1413 = vpow.pop %v1412
      %v1414 = vmul.f32 %v1408, 1.442695
      %v1415 = vpow.pop %v1414
      %v1416 = vmul.f32 %v1409, 1.442695
      %v1417 = vpow.pop %v1416
      %v1418 = vadd.f32 %v1411, 1.0
      %v1419 = vadd.f32 %v1413, 1.0
      %v1420 = vadd.f32 %v1415, 1.0
      %v1421 = vadd.f32 %v1417, 1.0
      %v1422 = vrcp.pop %v1418
      %v1423 = vmul.f32 1.0, %v1422
      %v1424 = vrcp.pop %v1419
      %v1425 = vmul.f32 1.0, %v1424
      %v1426 = vrcp.pop %v1420
      %v1427 = vmul.f32 1.0, %v1426
      %v1428 = vrcp.pop %v1421
      %v1429 = vmul.f32 1.0, %v1428
      %v1430 = vmul.f32 %v1399, %v1368
      %v1431 = vmul.f32 %v1401, %v1371
      %v1432 = vmul.f32 %v1403, %v1376
      %v1433 = vmul.f32 %v1405, %v1379
      %v1434 = vtanh.pop %v1430
      %v1435 = vtanh.pop %v1431
      %v1436 = vtanh.pop %v1432
      %v1437 = vtanh.pop %v1433
      %v1438 = vsub.f32 1.0, %v1423
      %v1439 = vsub.f32 1.0, %v1425
      %v1440 = vsub.f32 1.0, %v1427
      %v1441 = vsub.f32 1.0, %v1429
      %v1442 = vmul.f32 %v1438, %v1434
      %v1443 = vmul.f32 %v1439, %v1435
      %v1444 = vmul.f32 %v1440, %v1436
      %v1445 = vmul.f32 %v1441, %v1437
      %v1446 = vmul.f32 %v1423, %v1282
      %v1447 = vmul.f32 %v1425, %v1283
      %v1448 = vmul.f32 %v1427, %v1284
      %v1449 = vmul.f32 %v1429, %v1285
      %v1450 = vadd.f32 %v1442, %v1446
      %v1451 = vadd.f32 %v1443, %v1447
      %v1452 = vadd.f32 %v1444, %v1448
      %v1453 = vadd.f32 %v1445, %v1449
      %v1454 = vmul.f32 %v1450, %v205
      %v1455 = vmul.f32 %v1451, %v210
      %v1456 = vmul.f32 %v1452, %v215
      %v1457 = vmul.f32 %v1453, %v220
      %v1458 = vadd.f32 %v1454, %v1455
      %v1459 = vadd.f32 %v1458, %v1456
      %v1460 = vadd.f32 %v1459, %v1457
      %v1461 = vrot.slane %v1460, 4
      %v1462 = vadd.f32 %v1460, %v1461
      %v1463 = vrot.slane %v1462, 2
      %v1464 = vadd.f32 %v1462, %v1463
      %v1465 = vrot.slane %v1464, 1
      %v1466 = vadd.f32 %v1464, %v1465
      %v1467 = vpack.c.bf16 %v1451, %v1450
      %v1468 = vpack.c.bf16 %v1453, %v1452
      %1469 = vmatprep.subr.bf16.mxu0 0
      %1470 = vmatpush1.bf16.msra.mxu0 %v1467
      %1471 = vmatprep.subr.bf16.mxu0 0
      %1472 = vmatpush1.bf16.msra.mxu0 %v1468
      %1473 = vmatprep.subr.bf16.mxu0 0
      %1474 = vmatpush1.bf16.msra.mxu0 0
      %1475 = vmatprep.subr.bf16.mxu0 0
      %1476 = vmatpush1.bf16.msra.mxu0 0
      %1477 = vmatprep.subr.bf16.mxu0 0
      %1478 = vmatpush1.bf16.msra.mxu0 0
      %1479 = vmatprep.subr.bf16.mxu0 0
      %1480 = vmatpush1.bf16.msra.mxu0 0
      %1481 = vmatprep.subr.bf16.mxu0 0
      %1482 = vmatpush1.bf16.msra.mxu0 0
      %1483 = vmatprep.subr.bf16.mxu0 0
      %1484 = vmatpush1.bf16.msra.mxu0 0
      %1485 = vmatprep.subr.bf16.mxu0 0
      %1486 = vmatpush1.bf16.msra.mxu0 0
      %1487 = vmatprep.subr.bf16.mxu0 0
      %1488 = vmatpush1.bf16.msra.mxu0 0
      %1489 = vmatprep.subr.bf16.mxu0 0
      %1490 = vmatpush1.bf16.msra.mxu0 0
      %1491 = vmatprep.subr.bf16.mxu0 0
      %1492 = vmatpush1.bf16.msra.mxu0 0
      %1493 = vmatprep.subr.bf16.mxu0 0
      %1494 = vmatpush1.bf16.msra.mxu0 0
      %1495 = vmatprep.subr.bf16.mxu0 0
      %1496 = vmatpush1.bf16.msra.mxu0 0
      %1497 = vmatprep.subr.bf16.mxu0 0
      %1498 = vmatpush1.bf16.msra.mxu0 0
      %1499 = vmatprep.subr.bf16.mxu0 0
      %1500 = vmatpush1.bf16.msra.mxu0 0
      %1501 = vmatprep.mubr.bf16.mxu0 0
      %1502 = vmatmul.mubr.bf16.gmra.mrb[0].mxu0 %v276
      %v1503 = vpop.f32.mrb[0].mxu0
      %v1504 = vadd.f32 0.0, %v1503
      %v1505 = vpop.f32.mrb[0].mxu0
      %v1506 = vpop.f32.mrb[0].mxu0
      %v1507 = vadd.f32 0.0, %v1506
      %v1508 = vpop.f32.mrb[0].mxu0
      %1509 = vmatprep.mubr.bf16.mxu0 0
      %1510 = vmatmul.mubr.bf16.gmra.mrb[0].mxu0 %v279
      %v1511 = vpop.f32.mrb[0].mxu0
      %v1512 = vadd.f32 0.0, %v1511
      %v1513 = vpop.f32.mrb[0].mxu0
      %v1514 = vpop.f32.mrb[0].mxu0
      %v1515 = vadd.f32 0.0, %v1514
      %v1516 = vpop.f32.mrb[0].mxu0
      %1517 = vmatprep.mubr.bf16.mxu0 0
      %1518 = vmatmul.mubr.bf16.gmra.mrb[0].mxu0 %v282
      %v1519 = vpop.f32.mrb[0].mxu0
      %v1520 = vadd.f32 0.0, %v1519
      %v1521 = vpop.f32.mrb[0].mxu0
      %v1522 = vpop.f32.mrb[0].mxu0
      %v1523 = vadd.f32 0.0, %v1522
      %v1524 = vpop.f32.mrb[0].mxu0
      %1525 = vmatprep.mubr.bf16.mxu0 0
      %1526 = vmatmul.mubr.bf16.gmra.mrb[0].mxu0 %v285
      %v1527 = vpop.f32.mrb[0].mxu0
      %v1528 = vadd.f32 0.0, %v1527
      %v1529 = vpop.f32.mrb[0].mxu0
      %v1530 = vpop.f32.mrb[0].mxu0
      %v1531 = vadd.f32 0.0, %v1530
      %v1532 = vpop.f32.mrb[0].mxu0
      %1533 = vmatprep.mubr.bf16.mxu0 0
      %1534 = vmatmul.mubr.bf16.gmra.mrb[0].mxu0 %v288
      %v1535 = vpop.f32.mrb[0].mxu0
      %v1536 = vadd.f32 0.0, %v1535
      %v1537 = vpop.f32.mrb[0].mxu0
      %v1538 = vpop.f32.mrb[0].mxu0
      %v1539 = vadd.f32 0.0, %v1538
      %v1540 = vpop.f32.mrb[0].mxu0
      %1541 = vmatprep.mubr.bf16.mxu0 0
      %1542 = vmatmul.mubr.bf16.gmra.mrb[0].mxu0 %v291
      %v1543 = vpop.f32.mrb[0].mxu0
      %v1544 = vadd.f32 0.0, %v1543
      %v1545 = vpop.f32.mrb[0].mxu0
      %v1546 = vpop.f32.mrb[0].mxu0
      %v1547 = vadd.f32 0.0, %v1546
      %v1548 = vpop.f32.mrb[0].mxu0
      %1549 = vdwg.mxu0
      %v1550 = vxor.u32 %v1504, 2147483648
      %v1551 = vxor.u32 %v1507, 2147483648
      %v1552 = vxor.u32 %v1512, 2147483648
      %v1553 = vxor.u32 %v1515, 2147483648
      %v1554 = vmul.f32 %v1550, 1.442695
      %v1555 = vpow.pop %v1554
      %v1556 = vmul.f32 %v1551, 1.442695
      %v1557 = vpow.pop %v1556
      %v1558 = vmul.f32 %v1552, 1.442695
      %v1559 = vpow.pop %v1558
      %v1560 = vmul.f32 %v1553, 1.442695
      %v1561 = vpow.pop %v1560
      %v1562 = vadd.f32 %v1555, 1.0
      %v1563 = vadd.f32 %v1557, 1.0
      %v1564 = vadd.f32 %v1559, 1.0
      %v1565 = vadd.f32 %v1561, 1.0
      %v1566 = vrcp.pop %v1562
      %v1567 = vmul.f32 1.0, %v1566
      %v1568 = vrcp.pop %v1563
      %v1569 = vmul.f32 1.0, %v1568
      %v1570 = vrcp.pop %v1564
      %v1571 = vmul.f32 1.0, %v1570
      %v1572 = vrcp.pop %v1565
      %v1573 = vmul.f32 1.0, %v1572
      %v1574 = vxor.u32 %v1520, 2147483648
      %v1575 = vxor.u32 %v1523, 2147483648
      %v1576 = vxor.u32 %v1528, 2147483648
      %v1577 = vxor.u32 %v1531, 2147483648
      %v1578 = vmul.f32 %v1574, 1.442695
      %v1579 = vpow.pop %v1578
      %v1580 = vmul.f32 %v1575, 1.442695
      %v1581 = vpow.pop %v1580
      %v1582 = vmul.f32 %v1576, 1.442695
      %v1583 = vpow.pop %v1582
      %v1584 = vmul.f32 %v1577, 1.442695
      %v1585 = vpow.pop %v1584
      %v1586 = vadd.f32 %v1579, 1.0
      %v1587 = vadd.f32 %v1581, 1.0
      %v1588 = vadd.f32 %v1583, 1.0
      %v1589 = vadd.f32 %v1585, 1.0
      %v1590 = vrcp.pop %v1586
      %v1591 = vmul.f32 1.0, %v1590
      %v1592 = vrcp.pop %v1587
      %v1593 = vmul.f32 1.0, %v1592
      %v1594 = vrcp.pop %v1588
      %v1595 = vmul.f32 1.0, %v1594
      %v1596 = vrcp.pop %v1589
      %v1597 = vmul.f32 1.0, %v1596
      %v1598 = vmul.f32 %v1567, %v1536
      %v1599 = vmul.f32 %v1569, %v1539
      %v1600 = vmul.f32 %v1571, %v1544
      %v1601 = vmul.f32 %v1573, %v1547
      %v1602 = vtanh.pop %v1598
      %v1603 = vtanh.pop %v1599
      %v1604 = vtanh.pop %v1600
      %v1605 = vtanh.pop %v1601
      %v1606 = vsub.f32 1.0, %v1591
      %v1607 = vsub.f32 1.0, %v1593
      %v1608 = vsub.f32 1.0, %v1595
      %v1609 = vsub.f32 1.0, %v1597
      %v1610 = vmul.f32 %v1606, %v1602
      %v1611 = vmul.f32 %v1607, %v1603
      %v1612 = vmul.f32 %v1608, %v1604
      %v1613 = vmul.f32 %v1609, %v1605
      %v1614 = vmul.f32 %v1591, %v1450
      %v1615 = vmul.f32 %v1593, %v1451
      %v1616 = vmul.f32 %v1595, %v1452
      %v1617 = vmul.f32 %v1597, %v1453
      %v1618 = vadd.f32 %v1610, %v1614
      %v1619 = vadd.f32 %v1611, %v1615
      %v1620 = vadd.f32 %v1612, %v1616
      %v1621 = vadd.f32 %v1613, %v1617
      %v1622 = vmul.f32 %v1618, %v205
      %v1623 = vmul.f32 %v1619, %v210
      %v1624 = vmul.f32 %v1620, %v215
      %v1625 = vmul.f32 %v1621, %v220
      %v1626 = vadd.f32 %v1622, %v1623
      %v1627 = vadd.f32 %v1626, %v1624
      %v1628 = vadd.f32 %v1627, %v1625
      %v1629 = vrot.slane %v1628, 4
      %v1630 = vadd.f32 %v1628, %v1629
      %v1631 = vrot.slane %v1630, 2
      %v1632 = vadd.f32 %v1630, %v1631
      %v1633 = vrot.slane %v1632, 1
      %v1634 = vadd.f32 %v1632, %v1633
      %vm1635 = vcmask 1040384
      %v1636 = vsel %vm1635, %v458, %v626
      %vm1637 = vcmask 1041408
      %v1638 = vsel %vm1637, %v1636, %v794
      %vm1639 = vcmask 1042432
      %v1640 = vsel %vm1639, %v1638, %v962
      %vm1641 = vcmask 1043456
      %v1642 = vsel %vm1641, %v1640, %v1130
      %vm1643 = vcmask 1044480
      %v1644 = vsel %vm1643, %v1642, %v1298
      %vm1645 = vcmask 1045504
      %v1646 = vsel %vm1645, %v1644, %v1466
      %vm1647 = vcmask 1046528
      %v1648 = vsel %vm1647, %v1646, %v1634
      %s1649 = smul.u32 %s233, 8
      %v1650 = vadd.f32 %v1648, %v230
      %v1651 = vxor.u32 %v1650, 2147483648
      %v1652 = vmul.f32 %v1651, 1.442695
      %v1653 = vpow.pop %v1652
      %v1654 = vadd.f32 %v1653, 1.0
      %v1655 = vrcp.pop %v1654
      %v1656 = vmul.f32 1.0, %v1655
      %s1657 = scalar_lea.vmem [#allocation3], %s1649
      %1658 = vst [vmem:[%s1657] sm:$0xff] %v1656
    $region30: #{tpu_custom_call.1} parent=1 // loop_footer
      %s237 = sadd.s32 1, %s233
    $region31: #{tpu_custom_call.1} parent=1 // loop_footer_branch
      %232 = sbr.rel target = $region27
    $region32: #{tpu_custom_call.1} parent=1 // loop_exit
      _
    // Predicated region
    $region33: #{tpu_custom_call.1} parent=1 // pred_check
      _
    $region34: #{tpu_custom_call.1} parent=1 // pred_check_branch
      %1660 = sbr.rel (0) target = $region36
    $region35: #{tpu_custom_call.1} parent=1 // pred_region
      %s1662 = ssub.s32 16384, 16384
      %1663 = vsyncadd [#allocation4], %s1662
      %s1664 = sshll.u32 [#allocation3], 4
      %s1665 = int_to_ptr.vmem [resolvable:$true] %s1664
      %1670 = dma.vmem_to_hbm [thread:$0]  %s1665, 16384, %s6, [#allocation4], 128, 128, 8
    $region36: #{tpu_custom_call.1} parent=1 // pred_fallthru
      _
    // Predicated region
    $region37: #{tpu_custom_call.1} parent=1 // pred_check
      _
    $region38: #{tpu_custom_call.1} parent=1 // pred_check_branch
      %1672 = sbr.rel (0) target = $region40
    $region39: #{tpu_custom_call.1} parent=1 // pred_region
      %1673 = dma.done [#allocation4], 16384
    $region40: #{tpu_custom_call.1} parent=1 // pred_fallthru
      _
    %1674 = vsyncpa [#allocation4], 1

</llo_original>
